<compile_context>
chip_gen: v7x
topology: tpu7x:2x2x1
jax: 0.10.0
libtpu: 0.0.40
codegen_flags: <defaults>
</compile_context>

<pallas_src>
import math

import jax
import jax.numpy as jnp
from jax import lax
from jax.experimental import pallas as pl
from jax.experimental.pallas import tpu as pltpu


def _round_up(x, m):
    return ((x + m - 1) // m) * m


def _make_gcn_kernel(*, n_nodes, k_tile, feat_resident, project, needs_k_mask):
    """Builds the GCN kernel body.  Grid = (row_tiles, k_tiles).

    Static configuration (baked in via closure):
      project       : True  -> features are x (Fin wide), multiply by W in epilogue
                      False -> features are the precomputed support = x @ W
      feat_resident : features live in VMEM as one full-height block and are
                      sliced per K step; otherwise they are streamed per K tile
      needs_k_mask  : last K tile is partially out of bounds -> zero the adj tail
    """

    def kernel(*refs):
        if project:
            adj_ref, feat_ref, w_ref, b_ref, out_ref, acc_ref = refs
        else:
            adj_ref, feat_ref, b_ref, out_ref, acc_ref = refs

        k = pl.program_id(1)

        @pl.when(k == 0)
        def _():
            acc_ref[...] = jnp.zeros_like(acc_ref)

        # Adjacency tile in its stored dtype; mask the out-of-range node tail of
        # the reduction (stale VMEM past N must not contribute), then cast for
        # the MXU.  Accumulation stays f32.
        adj_t = adj_ref[...]
        if needs_k_mask:
            col = k * k_tile + lax.broadcasted_iota(jnp.int32, adj_t.shape, 1)
            adj_t = jnp.where(col < n_nodes, adj_t, jnp.zeros_like(adj_t))
        adj_t = adj_t.astype(jnp.bfloat16)

        if feat_resident:
            start = pl.multiple_of(k * k_tile, k_tile)
            feat_t = feat_ref[pl.ds(start, k_tile), :]
        else:
            feat_t = feat_ref[...]

        acc_ref[...] += jnp.dot(adj_t, feat_t, preferred_element_type=jnp.float32)

        @pl.when(k == pl.num_programs(1) - 1)
        def _():
            if project:
                agg = acc_ref[...].astype(jnp.bfloat16)
                out = jnp.dot(agg, w_ref[...], preferred_element_type=jnp.float32)
            else:
                out = acc_ref[...]
            out_ref[...] = (out + b_ref[...]).astype(out_ref.dtype)

    return kernel


def gcn_forward(x, adj, weight, bias=None, *, row_tile=512, k_tile=1024,
                feat_resident=None, out_dtype=None):
    """Pallas GraphConvolution forward: adj @ (x @ weight) + bias."""
    n_nodes, in_features = x.shape
    out_features = weight.shape[1]
    assert adj.shape == (n_nodes, n_nodes)
    assert weight.shape[0] == in_features

    out_dtype = x.dtype if out_dtype is None else out_dtype
    if bias is None:
        bias = jnp.zeros((out_features,), jnp.float32)

    # Lane-dense feature dims: pad Fin / Fout up to 128 multiples (cheap; the big
    # N x N adjacency is never padded or copied).
    fin_p = _round_up(in_features, 128)
    fout_p = _round_up(out_features, 128)

    # Fusion order: aggregate over the narrower feature width.
    #   Fin <= Fout : out = (adj @ x) @ W + b   (projection in the epilogue)
    #   Fin >  Fout : out = adj @ (x @ W) + b   (tiny support matmul precomputed)
    project = fin_p <= fout_p
    feat_w = fin_p if project else fout_p

    # ---- generation-aware VMEM budget -------------------------------------
    try:
        vmem_cap = int(pltpu.get_tpu_info().vmem_capacity_bytes)
    except Exception:
        vmem_cap = 64 * 1024 * 1024  # conservative (v7x-sized) fallback
    vmem_budget = (vmem_cap * 7) // 8  # leave compiler-scratch headroom

    # ---- tile sizing -------------------------------------------------------
    # Keep >= 2 row tiles so the "parallel" rows axis can shard across both
    # TensorCores on v7x; row tile multiple of 8, K tile multiple of 128.
    row_tile = max(8, min(_round_up(row_tile, 8),
                          _round_up(max(pl.cdiv(n_nodes, 2), 1), 8)))
    k_tile = max(128, min(_round_up(k_tile, 128), _round_up(n_nodes, 128)))

    adj_bytes = jnp.dtype(adj.dtype).itemsize
    out_bytes = jnp.dtype(out_dtype).itemsize

    def _est(rt, kt, resident):
        e = 2 * rt * kt * adj_bytes                        # streamed adj (double buffered)
        if resident:
            e += 2 * _round_up(n_nodes, kt) * feat_w * 2   # resident bf16 features
        else:
            e += 2 * kt * feat_w * 2                       # streamed bf16 features
        if project:
            e += 2 * fin_p * fout_p * 2                    # resident bf16 weight
        e += 2 * fout_p * 4                                # bias
        e += rt * feat_w * 4                               # f32 accumulator scratch
        e += 2 * rt * fout_p * out_bytes                   # output tile (double buffered)
        return e

    resident = feat_resident
    if resident is None:
        resident = 2 * _round_up(n_nodes, k_tile) * feat_w * 2 <= vmem_budget // 3
    while _est(row_tile, k_tile, resident) > vmem_budget:
        if resident and feat_resident is None:
            resident = False
        elif k_tile > 256:
            k_tile //= 2
        elif row_tile > 64:
            row_tile //= 2
        else:
            break

    num_k = pl.cdiv(n_nodes, k_tile)
    n_k_p = num_k * k_tile
    needs_k_mask = (n_nodes % k_tile) != 0

    # ---- operand preparation (adj untouched; small operands padded) -------
    bias2d = jnp.pad(bias.astype(jnp.float32),
                     (0, fout_p - out_features)).reshape(1, fout_p)
    if project:
        feat = jnp.pad(x.astype(jnp.bfloat16),
                       ((0, n_k_p - n_nodes), (0, fin_p - in_features)))
        w_p = jnp.pad(weight.astype(jnp.bfloat16),
                      ((0, fin_p - in_features), (0, fout_p - out_features)))
    else:
        support = jnp.dot(x.astype(jnp.float32), weight.astype(jnp.float32))
        feat = jnp.pad(support.astype(jnp.bfloat16),
                       ((0, n_k_p - n_nodes), (0, fout_p - out_features)))
        w_p = None

    grid = (pl.cdiv(n_nodes, row_tile), num_k)

    if resident:
        feat_spec = pl.BlockSpec((n_k_p, feat_w), lambda i, k: (0, 0))
    else:
        feat_spec = pl.BlockSpec((k_tile, feat_w), lambda i, k: (k, 0))

    in_specs = [pl.BlockSpec((row_tile, k_tile), lambda i, k: (i, k)),  # adj tile
                feat_spec]                                               # features
    operands = [adj, feat]
    if project:
        in_specs.append(pl.BlockSpec((fin_p, fout_p), lambda i, k: (0, 0)))  # W
        operands.append(w_p)
    in_specs.append(pl.BlockSpec((1, fout_p), lambda i, k: (0, 0)))          # bias
    operands.append(bias2d)

    kernel = _make_gcn_kernel(n_nodes=n_nodes, k_tile=k_tile,
                              feat_resident=resident, project=project,
                              needs_k_mask=needs_k_mask)

    vmem_limit = int(min(vmem_budget,
                         max(32 * 1024 * 1024,
                             2 * _est(row_tile, k_tile, resident))))

    out_p = pl.pallas_call(
        kernel,
        out_shape=jax.ShapeDtypeStruct((n_nodes, fout_p), out_dtype),
        grid_spec=pltpu.PrefetchScalarGridSpec(
            num_scalar_prefetch=0,
            grid=grid,
            in_specs=in_specs,
            out_specs=pl.BlockSpec((row_tile, fout_p), lambda i, k: (i, 0)),
            scratch_shapes=[pltpu.VMEM((row_tile, feat_w), jnp.float32)],
        ),
        compiler_params=pltpu.CompilerParams(
            dimension_semantics=("parallel", "arbitrary"),
            vmem_limit_bytes=vmem_limit,
        ),
    )(*operands)

    return out_p[:, :out_features]


def init_params(key, in_features, out_features):
    """Matches reset_parameters(): U(-stdv, stdv), stdv = 1/sqrt(out_features)."""
    stdv = 1.0 / math.sqrt(out_features)
    kw, kb = jax.random.split(key)
    weight = jax.random.uniform(kw, (in_features, out_features), jnp.float32,
                                minval=-stdv, maxval=stdv)
    bias = jax.random.uniform(kb, (out_features,), jnp.float32,
                              minval=-stdv, maxval=stdv)
    return weight, bias


def _run_case(key, n, fin, fout, **kw):
    kx, ka, kp = jax.random.split(key, 3)
    x = jax.random.normal(kx, (n, fin), jnp.float32)
    adj_raw = jax.random.uniform(ka, (n, n), jnp.float32)
    adj = adj_raw / jnp.sum(adj_raw, axis=1, keepdims=True)  # dense row-normalized adjacency
    weight, bias = init_params(kp, fin, fout)

    out = jax.block_until_ready(gcn_forward(x, adj, weight, bias, **kw))

    ref = adj @ (x @ weight) + bias[None, :]
    assert out.shape == (n, fout)
    err = float(jnp.max(jnp.abs(out - ref)))
    scale = float(jnp.max(jnp.abs(ref))) + 1e-6
    assert err <= 3e-2 * scale + 1e-3, f"mismatch vs reference: err={err}, scale={scale}"


if __name__ == "__main__":
    key = jax.random.PRNGKey(0)
    k1, k2 = jax.random.split(key)

    # Case 1: Fin < Fout -> aggregate-then-project path, resident features,
    # non-tile-aligned N (masked K tail, partial row tile), 2x2 grid.
    _run_case(k1, 500, 128, 256, row_tile=256, k_tile=256)

    # Case 2: Fout < Fin -> precomputed-support path, streamed features,
    # partial tiles in both grid axes.
    _run_case(k2, 300, 256, 128, row_tile=128, k_tile=128, feat_resident=False)

    print("KERNEL_OK")
</pallas_src>

<mosaic_0001>
module attributes {stable_mosaic.version = 11 : i64} {
  func.func @kernel(%arg0: i32, %arg1: i32, %arg2: memref<256x256xf32, #tpu.memory_space<vmem>>, %arg3: memref<512x128xbf16, #tpu.memory_space<vmem>>, %arg4: memref<128x256xbf16, #tpu.memory_space<vmem>>, %arg5: memref<1x256xf32, #tpu.memory_space<vmem>>, %arg6: memref<256x256xf32, #tpu.memory_space<vmem>>, %arg7: memref<256x128xf32, #tpu.memory_space<vmem>>) attributes {dimension_semantics = [#tpu.dimension_semantics<parallel>, #tpu.dimension_semantics<arbitrary>], iteration_bounds = array<i64: 2, 2>, scalar_prefetch = 0 : i64, scratch_operands = 1 : i64, tpu.core_type = #tpu.core_type<tc>, window_params = [{transform_indices = @transform_0, window_bounds = array<i64: 256, 256>}, {pipeline_mode = #tpu.pipeline_mode<synchronous>, transform_indices = @transform_1, window_bounds = array<i64: 512, 128>}, {pipeline_mode = #tpu.pipeline_mode<synchronous>, transform_indices = @transform_2, window_bounds = array<i64: 128, 256>}, {pipeline_mode = #tpu.pipeline_mode<synchronous>, transform_indices = @transform_3, window_bounds = array<i64: 1, 256>}, {transform_indices = @transform_4, window_bounds = array<i64: 256, 256>}]} {
    %c0_i32 = arith.constant 0 : i32
    %0 = arith.cmpi eq, %arg1, %c0_i32 : i32
    %1 = arith.extui %0 : i1 to i32
    %c0_i32_0 = arith.constant 0 : i32
    %2 = arith.cmpi ne, %1, %c0_i32_0 : i32
    scf.if %2 {
      %cst_10 = arith.constant 0.000000e+00 : f32
      %24 = vector.broadcast %cst_10 : f32 to vector<256x128xf32>
      %c0_11 = arith.constant 0 : index
      %c0_12 = arith.constant 0 : index
      %25 = vector.load %arg7[%c0_11, %c0_12] : memref<256x128xf32, #tpu.memory_space<vmem>>, vector<256x128xf32>
      tpu.vector_store %arg7[%c0_11, %c0_12], %24 {strides = array<i32>} : memref<256x128xf32, #tpu.memory_space<vmem>>, vector<256x128xf32>,
    } else {
    }
    %c0 = arith.constant 0 : index
    %c0_1 = arith.constant 0 : index
    %3 = vector.load %arg2[%c0, %c0_1] : memref<256x256xf32, #tpu.memory_space<vmem>>, vector<256x256xf32>
    %c256_i32 = arith.constant 256 : i32
    %4 = arith.muli %arg1, %c256_i32 : i32
    %5 = tpu.iota {dimensions = array<i32: 1>} : vector<256x256xi32>
    %6 = vector.broadcast %4 : i32 to vector<256x256xi32>
    %7 = arith.addi %6, %5 : vector<256x256xi32>
    %c500_i32 = arith.constant 500 : i32
    %8 = vector.broadcast %c500_i32 : i32 to vector<256x256xi32>
    %9 = arith.cmpi slt, %7, %8 : vector<256x256xi32>
    %cst = arith.constant 0.000000e+00 : f32
    %10 = vector.broadcast %cst : f32 to vector<256x256xf32>
    %11 = arith.select %9, %3, %10 : vector<256x256xi1>, vector<256x256xf32>
    %12 = arith.truncf %11 : vector<256x256xf32> to vector<256x256xbf16>
    %c256_i32_2 = arith.constant 256 : i32
    %13 = arith.muli %arg1, %c256_i32_2 : i32
    %14 = tpu.assume_multiple %13, 256 : i32
    %15 = arith.index_cast %14 : i32 to index
    %c0_3 = arith.constant 0 : index
    %16 = vector.load %arg3[%15, %c0_3] : memref<512x128xbf16, #tpu.memory_space<vmem>>, vector<256x128xbf16>
    %c0_4 = arith.constant 0 : index
    %c0_5 = arith.constant 0 : index
    %17 = vector.load %arg7[%c0_4, %c0_5] : memref<256x128xf32, #tpu.memory_space<vmem>>, vector<256x128xf32>
    %cst_6 = arith.constant dense<0.000000e+00> : vector<256x128xf32>
    %18 = tpu.matmul %12, %16, %cst_6 {dimension_numbers = #tpu.dot_dimension_numbers<[1], [0], [0], [1], [0, 0, 1, 1], [], []>} : vector<256x256xbf16>, vector<256x128xbf16>, vector<256x128xf32> -> vector<256x128xf32>
    %19 = arith.addf %17, %18 : vector<256x128xf32>
    %c0_7 = arith.constant 0 : index
    %c0_8 = arith.constant 0 : index
    %20 = vector.load %arg7[%c0_7, %c0_8] : memref<256x128xf32, #tpu.memory_space<vmem>>, vector<256x128xf32>
    tpu.vector_store %arg7[%c0_7, %c0_8], %19 {strides = array<i32>} : memref<256x128xf32, #tpu.memory_space<vmem>>, vector<256x128xf32>,
    %c1_i32 = arith.constant 1 : i32
    %21 = arith.cmpi eq, %arg1, %c1_i32 : i32
    %22 = arith.extui %21 : i1 to i32
    %c0_i32_9 = arith.constant 0 : i32
    %23 = arith.cmpi ne, %22, %c0_i32_9 : i32
    scf.if %23 {
      %c0_10 = arith.constant 0 : index
      %c0_11 = arith.constant 0 : index
      %24 = vector.load %arg7[%c0_10, %c0_11] : memref<256x128xf32, #tpu.memory_space<vmem>>, vector<256x128xf32>
      %25 = arith.truncf %24 : vector<256x128xf32> to vector<256x128xbf16>
      %c0_12 = arith.constant 0 : index
      %c0_13 = arith.constant 0 : index
      %26 = vector.load %arg4[%c0_12, %c0_13] : memref<128x256xbf16, #tpu.memory_space<vmem>>, vector<128x256xbf16>
      %cst_14 = arith.constant dense<0.000000e+00> : vector<256x256xf32>
      %27 = tpu.matmul %25, %26, %cst_14 {dimension_numbers = #tpu.dot_dimension_numbers<[1], [0], [0], [1], [0, 0, 1, 1], [], []>} : vector<256x128xbf16>, vector<128x256xbf16>, vector<256x256xf32> -> vector<256x256xf32>
      %c0_15 = arith.constant 0 : index
      %c0_16 = arith.constant 0 : index
      %28 = vector.load %arg5[%c0_15, %c0_16] : memref<1x256xf32, #tpu.memory_space<vmem>>, vector<1x256xf32>
      %29 = vector.broadcast %28 : vector<1x256xf32> to vector<256x256xf32>
      %30 = arith.addf %27, %29 : vector<256x256xf32>
      %c0_17 = arith.constant 0 : index
      %c0_18 = arith.constant 0 : index
      %31 = vector.load %arg6[%c0_17, %c0_18] : memref<256x256xf32, #tpu.memory_space<vmem>>, vector<256x256xf32>
      tpu.vector_store %arg6[%c0_17, %c0_18], %30 {strides = array<i32>} : memref<256x256xf32, #tpu.memory_space<vmem>>, vector<256x256xf32>,
    } else {
    }
    return
  }
  func.func @transform_0(%arg0: i32, %arg1: i32) -> (i32, i32) {
    %c0_i32 = arith.constant 0 : i32
    return %arg0, %arg1 : i32, i32
  }
  func.func @transform_1(%arg0: i32, %arg1: i32) -> (i32, i32) {
    %c0_i32 = arith.constant 0 : i32
    %c0_i32_0 = arith.constant 0 : i32
    %c0_i32_1 = arith.constant 0 : i32
    return %c0_i32, %c0_i32_0 : i32, i32
  }
  func.func @transform_2(%arg0: i32, %arg1: i32) -> (i32, i32) {
    %c0_i32 = arith.constant 0 : i32
    %c0_i32_0 = arith.constant 0 : i32
    %c0_i32_1 = arith.constant 0 : i32
    return %c0_i32, %c0_i32_0 : i32, i32
  }
  func.func @transform_3(%arg0: i32, %arg1: i32) -> (i32, i32) {
    %c0_i32 = arith.constant 0 : i32
    %c0_i32_0 = arith.constant 0 : i32
    %c0_i32_1 = arith.constant 0 : i32
    return %c0_i32, %c0_i32_0 : i32, i32
  }
  func.func @transform_4(%arg0: i32, %arg1: i32) -> (i32, i32) {
    %c0_i32 = arith.constant 0 : i32
    %c0_i32_0 = arith.constant 0 : i32
    return %arg0, %c0_i32 : i32, i32
  }
}

</mosaic_0001>

<llo_original>
// kernel: tpu_custom_call.1
$region0: #{tpu_custom_call.1}
  #allocation0 [shape = 'u32[]', space=smem, size = 0x4, offset = 0x4, fixed_abs, tag = 'smem constant byte address 0x4 - core index']
  #allocation1 [shape = 'u32[144,128]{1,0:T(1,128)}', space=vmem, size = 0x12000, scoped, tag = 'internal scratch']
  #allocation2 [shape = 'f32[256,128]{1,0:T(8,128)}', space=vmem, size = 0x20000, scoped, tag = 'scratch operand']
  %s0 = inlined_call_operand.hbm [shape: f32[500,500], index: 0, kind: input, shape index: {}]
  %s1 = inlined_call_operand.hbm [shape: bf16[512,128], index: 1, kind: input, shape index: {}]
  %s2 = inlined_call_operand.hbm [shape: bf16[128,256], index: 2, kind: input, shape index: {}]
  %s3 = inlined_call_operand.vmem [shape: f32[1,256], index: 3, kind: input, shape index: {}]
  %s4 = inlined_call_operand.hbm [shape: f32[500,256], index: 4, kind: output, shape index: {}]
  %s5 = sld [smem:[#allocation0]]
  $region69: #{tpu_custom_call.1} parent=0
    _
  %s7 = ssub.s32 1, %s5
  %s8 = scalar_select 0, %s7, %s5
  $region1: #{tpu_custom_call.1} parent=0
    #allocation3 [shape = 'u8[524288]{0}', space=vmem, size = 0x80000, scoped, tag = 'input window, operand 0']
    #allocation4 [shape = 's32[2]{0}', space=sflag, size = 0x8, scoped, tag = 'scoped memory for tpu_custom_call.1']
    #allocation5 [shape = 's32[2]{0}', space=sflag, size = 0x8, scoped, tag = 'scoped memory for tpu_custom_call.1']
    #allocation6 [shape = 'u8[131072]{0}', space=vmem, size = 0x20000, scoped, tag = 'input window, operand 1, single buffered']
    #allocation7 [shape = 's32[1]{0}', space=sflag, size = 0x4, scoped, tag = 'scoped memory for tpu_custom_call.1']
    #allocation8 [shape = 'u8[65536]{0}', space=vmem, size = 0x10000, scoped, tag = 'input window, operand 2, single buffered']
    #allocation9 [shape = 'u8[524288]{0}', space=vmem, size = 0x80000, scoped, tag = 'output window, operand 0']
    %9 = vsyncpa [#allocation4], 0
    %s10 = scalar_lea.sflag [#allocation4], 1
    %11 = vsyncpa %s10, 0
    %12 = vsyncpa [#allocation7], 0
    %13 = vsyncpa [#allocation5], 0
    %s14 = scalar_lea.sflag [#allocation5], 1
    %15 = vsyncpa %s14, 0
    loop: start=0, step=1, limit=6
    $region2: #{tpu_custom_call.1} parent=1 // loop_pre_header
      _
    $region3: #{tpu_custom_call.1} parent=1 // loop_header
      %s17 = sphi 0, %s21
      %p18 = scmp.ge.s32.totalorder %s17, 6
      %s24 = sphi 0, %s36
      %s25 = sphi 0, %s32
      %s26 = sphi 0, %s24
      %s27 = sphi 0, %s25
      %s28 = sphi 0, %s26
      %s29 = sphi 0, %s27
      %s41 = sphi 0, %s43
      %s44 = sphi 0, %s41
      %s45 = sphi 0, %s44
      %s61 = sphi 0, %s45
      %s65 = sphi 0, %s65
      %s67 = sphi 0, %s65
      %s68 = sphi 0, %s67
      %s82 = sphi 0, %s68
      %s86 = sphi 0, %s86
      %s88 = sphi 0, %s86
      %s89 = sphi 0, %s88
      %s103 = sphi 0, %s89
      %s107 = sphi 0, %s107
      %s109 = sphi 0, %s107
      %s110 = sphi 0, %s109
      %s124 = sphi 0, %s110
      %s130 = sphi 0, %s132
      %s133 = sphi 0, %s130
      %s134 = sphi 0, %s133
      %s150 = sphi 0, %s134
    $region4: #{tpu_custom_call.1} parent=1 // loop_header_branch
      %20 = sbr.rel (%p18) target = $region8
    $region5: #{tpu_custom_call.1} parent=1 // loop_body
      %s22 = ssub.s32 %s17, 1
      %s23 = ssub.s32 %s17, 2
      %s30 = sadd.s32 1, %s25
      %p31 = scmp.ge.s32.totalorder %s30, 2
      %s32 = scalar_select %p31, 0, %s30
      %s33 = sadd.s32 1, %s24
      %s34 = scalar_select %p31, %s33, %s24
      %p35 = scmp.ge.s32.totalorder %s34, 2
      %s36 = scalar_select %p35, 0, %s34
      %s37 = ssub.s32 %s24, %s36
      %s38 = ssub.s32 %s25, %s32
      %s39 = sor.u32 %s37, %s38
      %p40 = scmp.eq.s32.totalorder %s39, 0
      %s42 = sadd.s32 %s41, 1
      %s43 = scalar_select %p40, %s41, %s42
      %p46 = pneg %p40
      %p47 = scmp.eq.s32.totalorder %s17, 3
      %p48 = por %p46, %p47
      %p49 = scmp.ne.s32.totalorder %s41, %s44
      %p50 = scmp.eq.s32.totalorder %s17, 0
      %p51 = por %p49, %p50
      %p52 = scmp.ne.s32.totalorder %s41, %s44
      %p53 = scmp.eq.s32.totalorder %s22, 3
      %p54 = por %p52, %p53
      %p55 = scmp.ne.s32.totalorder %s44, %s45
      %p56 = scmp.eq.s32.totalorder %s22, 0
      %p57 = por %p55, %p56
      %p58 = scmp.ne.s32.totalorder %s44, %s45
      %p59 = scmp.eq.s32.totalorder %s23, 3
      %p60 = por %p58, %p59
      %p62 = scmp.ne.s32.totalorder %s45, %s61
      %p63 = scmp.eq.s32.totalorder %s23, 0
      %p64 = por %p62, %p63
      %s66 = sadd.s32 %s65, 1
      %p69 = scmp.eq.s32.totalorder %s17, 3
      %p70 = scmp.ne.s32.totalorder %s65, %s67
      %p71 = scmp.eq.s32.totalorder %s17, 0
      %p72 = por %p70, %p71
      %p73 = scmp.ne.s32.totalorder %s65, %s67
      %p74 = scmp.eq.s32.totalorder %s22, 3
      %p75 = por %p73, %p74
      %p76 = scmp.ne.s32.totalorder %s67, %s68
      %p77 = scmp.eq.s32.totalorder %s22, 0
      %p78 = por %p76, %p77
      %p79 = scmp.ne.s32.totalorder %s67, %s68
      %p80 = scmp.eq.s32.totalorder %s23, 3
      %p81 = por %p79, %p80
      %p83 = scmp.ne.s32.totalorder %s68, %s82
      %p84 = scmp.eq.s32.totalorder %s23, 0
      %p85 = por %p83, %p84
      %s87 = sadd.s32 %s86, 1
      %p90 = scmp.eq.s32.totalorder %s17, 3
      %p91 = scmp.ne.s32.totalorder %s86, %s88
      %p92 = scmp.eq.s32.totalorder %s17, 0
      %p93 = por %p91, %p92
      %p94 = scmp.ne.s32.totalorder %s86, %s88
      %p95 = scmp.eq.s32.totalorder %s22, 3
      %p96 = por %p94, %p95
      %p97 = scmp.ne.s32.totalorder %s88, %s89
      %p98 = scmp.eq.s32.totalorder %s22, 0
      %p99 = por %p97, %p98
      %p100 = scmp.ne.s32.totalorder %s88, %s89
      %p101 = scmp.eq.s32.totalorder %s23, 3
      %p102 = por %p100, %p101
      %p104 = scmp.ne.s32.totalorder %s89, %s103
      %p105 = scmp.eq.s32.totalorder %s23, 0
      %p106 = por %p104, %p105
      %s108 = sadd.s32 %s107, 1
      %p111 = scmp.eq.s32.totalorder %s17, 3
      %p112 = scmp.ne.s32.totalorder %s107, %s109
      %p113 = scmp.eq.s32.totalorder %s17, 0
      %p114 = por %p112, %p113
      %p115 = scmp.ne.s32.totalorder %s107, %s109
      %p116 = scmp.eq.s32.totalorder %s22, 3
      %p117 = por %p115, %p116
      %p118 = scmp.ne.s32.totalorder %s109, %s110
      %p119 = scmp.eq.s32.totalorder %s22, 0
      %p120 = por %p118, %p119
      %p121 = scmp.ne.s32.totalorder %s109, %s110
      %p122 = scmp.eq.s32.totalorder %s23, 3
      %p123 = por %p121, %p122
      %p125 = scmp.ne.s32.totalorder %s110, %s124
      %p126 = scmp.eq.s32.totalorder %s23, 0
      %p127 = por %p125, %p126
      %s128 = ssub.s32 %s24, %s36
      %p129 = scmp.eq.s32.totalorder %s128, 0
      %s131 = sadd.s32 %s130, 1
      %s132 = scalar_select %p129, %s130, %s131
      %p135 = pneg %p129
      %p136 = scmp.eq.s32.totalorder %s17, 3
      %p137 = por %p135, %p136
      %p138 = scmp.ne.s32.totalorder %s130, %s133
      %p139 = scmp.eq.s32.totalorder %s17, 0
      %p140 = por %p138, %p139
      %p141 = scmp.ne.s32.totalorder %s130, %s133
      %p142 = scmp.eq.s32.totalorder %s22, 3
      %p143 = por %p141, %p142
      %p144 = scmp.ne.s32.totalorder %s133, %s134
      %p145 = scmp.eq.s32.totalorder %s22, 0
      %p146 = por %p144, %p145
      %p147 = scmp.ne.s32.totalorder %s133, %s134
      %p148 = scmp.eq.s32.totalorder %s23, 3
      %p149 = por %p147, %p148
      %p151 = scmp.ne.s32.totalorder %s134, %s150
      %p152 = scmp.eq.s32.totalorder %s23, 0
      %p153 = por %p151, %p152
      %p154 = scmp.le.s32.totalorder 1, %s17
      %p155 = scmp.lt.s32.totalorder %s17, 5
      %p156 = pnand %p154, %p155
      %p157 = pneg %p156
      // Predicated region
      $region9: #{tpu_custom_call.1} parent=5 // pred_check
        _
      $region10: #{tpu_custom_call.1} parent=5 // pred_check_branch
        %159 = sbr.rel (%p156) target = $region12
      $region11: #{tpu_custom_call.1} parent=5 // pred_region
        %s160 = ssub.s32 %s17, 1
        // Predicated region
        $region13: #{tpu_custom_call.1} parent=11 // pred_check
          %p161 = pneg %p78
        $region14: #{tpu_custom_call.1} parent=11 // pred_check_branch
          %163 = sbr.rel (%p161) target = $region16
        $region15: #{tpu_custom_call.1} parent=11 // pred_region
          %s165 = ssub.s32 4096, 4096
          %166 = vsyncadd [#allocation7], %s165
          %s167 = sshll.u32 [#allocation6], 4
          %s168 = int_to_ptr.vmem [resolvable:$true] %s167
          %173 = dma.hbm_to_vmem [thread:$0]  %s1, 4096, %s168, [#allocation7], 64, 64, 4
        $region16: #{tpu_custom_call.1} parent=11 // pred_fallthru
          _
        // Predicated region
        $region17: #{tpu_custom_call.1} parent=11 // pred_check
          %p174 = pneg %p99
        $region18: #{tpu_custom_call.1} parent=11 // pred_check_branch
          %176 = sbr.rel (%p174) target = $region20
        $region19: #{tpu_custom_call.1} parent=11 // pred_region
          %s178 = ssub.s32 2048, 2048
          %179 = vsyncadd [#allocation7], %s178
          %s180 = sshll.u32 [#allocation8], 4
          %s181 = int_to_ptr.vmem [resolvable:$true] %s180
          %186 = dma.hbm_to_vmem [thread:$0]  %s2, 2048, %s181, [#allocation7], 128, 128, 8
        $region20: #{tpu_custom_call.1} parent=11 // pred_fallthru
          _
        // Predicated region
        $region21: #{tpu_custom_call.1} parent=11 // pred_check
          %p187 = pneg %p120
        $region22: #{tpu_custom_call.1} parent=11 // pred_check_branch
          %189 = sbr.rel (%p187) target = $region24
        $region23: #{tpu_custom_call.1} parent=11 // pred_region
          _
        $region24: #{tpu_custom_call.1} parent=11 // pred_fallthru
          _
      $region12: #{tpu_custom_call.1} parent=5 // pred_fallthru
        _
      %p190 = scmp.lt.s32.totalorder %s17, 4
      // Predicated region
      $region25: #{tpu_custom_call.1} parent=5 // pred_check
        %p191 = pneg %p190
      $region26: #{tpu_custom_call.1} parent=5 // pred_check_branch
        %193 = sbr.rel (%p191) target = $region28
      $region27: #{tpu_custom_call.1} parent=5 // pred_region
        // Predicated region
        $region29: #{tpu_custom_call.1} parent=27 // pred_check
          %p194 = pneg %p51
        $region30: #{tpu_custom_call.1} parent=27 // pred_check_branch
          %196 = sbr.rel (%p194) target = $region32
        $region31: #{tpu_custom_call.1} parent=27 // pred_region
          %s197 = sand.u32 %s41, 1
          %s198 = scalar_lea.sflag [#allocation4], %s197
          %s199 = sand.u32 %s41, 1
          %s200 = smul.addr %s199, 512
          %s201 = scalar_lea.vmem [#allocation3], %s200
          %s202 = smul.u32 32, %s24
          %s203 = smul.u32 2, %s25
          %s204 = ssub.s32 63, %s202
          %p205 = scmp.lt.s32.totalorder %s204, 32
          %s206 = scalar_select %p205, %s204, 32
          %s207 = smul.u32 128, %s206
          %s208 = smul.u32 %s207, 2
          %s210 = ssub.s32 8192, %s208
          %211 = vsyncadd %s198, %s210
          %p212 = scmp.ne.s32.totalorder 0, %s208
          %s213 = smul.addr %s202, 4
          %s214 = sadd.s32 %s203, %s213
          %s215 = smul.addr %s214, 128
          %s216 = scalar_lea.hbm %s0, %s215
          %s217 = smul.u32 16, %s206
          %s218 = sshll.u32 %s201, 4
          %s219 = int_to_ptr.vmem [resolvable:$true] %s218
          %s220 = sshll.u32 %s217, 4
          %224 = dma.hbm_to_vmem [thread:$0]  (%p212), %s216, %s220, %s219, %s198, 512, 256, 16
        $region32: #{tpu_custom_call.1} parent=27 // pred_fallthru
          _
      $region28: #{tpu_custom_call.1} parent=5 // pred_fallthru
        _
      %p225 = scmp.le.s32.totalorder 1, %s17
      %p226 = scmp.lt.s32.totalorder %s17, 5
      %p227 = pnand %p225, %p226
      %p228 = pneg %p227
      // Predicated region
      $region33: #{tpu_custom_call.1} parent=5 // pred_check
        _
      $region34: #{tpu_custom_call.1} parent=5 // pred_check_branch
        %230 = sbr.rel (%p227) target = $region36
      $region35: #{tpu_custom_call.1} parent=5 // pred_region
        %s231 = ssub.s32 %s17, 1
        %s232 = sand.u32 %s44, 1
        %s233 = scalar_lea.sflag [#allocation4], %s232
        %s234 = sand.u32 %s44, 1
        %s235 = smul.addr %s234, 512
        %s236 = scalar_lea.vmem [#allocation3], %s235
        // Predicated region
        $region37: #{tpu_custom_call.1} parent=35 // pred_check
          %p237 = pneg %p57
        $region38: #{tpu_custom_call.1} parent=35 // pred_check_branch
          %239 = sbr.rel (%p237) target = $region40
        $region39: #{tpu_custom_call.1} parent=35 // pred_region
          %240 = dma.done %s233, 8192
        $region40: #{tpu_custom_call.1} parent=35 // pred_fallthru
          _
        // Predicated region
        $region41: #{tpu_custom_call.1} parent=35 // pred_check
          %p241 = pneg %p78
        $region42: #{tpu_custom_call.1} parent=35 // pred_check_branch
          %243 = sbr.rel (%p241) target = $region44
        $region43: #{tpu_custom_call.1} parent=35 // pred_region
          %244 = dma.done [#allocation7], 4096
        $region44: #{tpu_custom_call.1} parent=35 // pred_fallthru
          _
        // Predicated region
        $region45: #{tpu_custom_call.1} parent=35 // pred_check
          %p245 = pneg %p99
        $region46: #{tpu_custom_call.1} parent=35 // pred_check_branch
          %247 = sbr.rel (%p245) target = $region48
        $region47: #{tpu_custom_call.1} parent=35 // pred_region
          %248 = dma.done [#allocation7], 2048
        $region48: #{tpu_custom_call.1} parent=35 // pred_fallthru
          _
        %s249 = sand.u32 %s44, 1
        %s250 = scalar_lea.sflag [#allocation4], %s249
        %s251 = sand.u32 %s44, 1
        %s252 = smul.addr %s251, 512
        %s253 = scalar_lea.vmem [#allocation3], %s252
        %p254 = pneg %p57
        %p255 = pneg %p54
        %p256 = pneg %p78
        %p257 = pneg %p75
        %p258 = pneg %p99
        %p259 = pneg %p96
        %p260 = pneg %p120
        %p261 = pneg %p117
        %p262 = pneg %p146
        %p263 = pneg %p143
        %s264 = sand.u32 %s133, 1
        %s265 = scalar_lea.sflag [#allocation5], %s264
        %s266 = sand.u32 %s133, 1
        %s267 = smul.addr %s266, 512
        %s268 = scalar_lea.vmem [#allocation9], %s267
        %s269 = smul.u32 32, %s26
        %s270 = smul.u32 2, %s27
        %s271 = ssub.s32 63, %s269
        %p272 = scmp.lt.s32.totalorder %s271, 32
        %s273 = scalar_select %p272, %s271, 32
        %s274 = smul.u32 128, %s273
        %s275 = smul.u32 %s274, 2
        %s276 = smul.u32 32, %s26
        %s277 = ssub.s32 63, %s276
        %p278 = scmp.lt.s32.totalorder %s277, 32
        %s279 = scalar_select %p278, %s277, 32
        %s280 = smul.u32 128, %s279
        %s281 = smul.u32 %s280, 2
        %p283 = scmp.eq.s32.totalorder %s27, 0
        // Predicated region
        $region49: #{tpu_custom_call.1} parent=35 // pred_check
          %p284 = pneg %p283
        $region50: #{tpu_custom_call.1} parent=35 // pred_check_branch
          %286 = sbr.rel (%p284) target = $region52
        $region51: #{tpu_custom_call.1} parent=35 // pred_region
          %287 = vst [vmem:[#allocation2] sm:$0xff] 0.0
          %288 = vst [vmem:[#allocation2 + $0x8] sm:$0xff] 0.0
          %289 = vst [vmem:[#allocation2 + $0x10] sm:$0xff] 0.0
          %290 = vst [vmem:[#allocation2 + $0x18] sm:$0xff] 0.0
          %291 = vst [vmem:[#allocation2 + $0x20] sm:$0xff] 0.0
          %292 = vst [vmem:[#allocation2 + $0x28] sm:$0xff] 0.0
          %293 = vst [vmem:[#allocation2 + $0x30] sm:$0xff] 0.0
          %294 = vst [vmem:[#allocation2 + $0x38] sm:$0xff] 0.0
          %295 = vst [vmem:[#allocation2 + $0x40] sm:$0xff] 0.0
          %296 = vst [vmem:[#allocation2 + $0x48] sm:$0xff] 0.0
          %297 = vst [vmem:[#allocation2 + $0x50] sm:$0xff] 0.0
          %298 = vst [vmem:[#allocation2 + $0x58] sm:$0xff] 0.0
          %299 = vst [vmem:[#allocation2 + $0x60] sm:$0xff] 0.0
          %300 = vst [vmem:[#allocation2 + $0x68] sm:$0xff] 0.0
          %301 = vst [vmem:[#allocation2 + $0x70] sm:$0xff] 0.0
          %302 = vst [vmem:[#allocation2 + $0x78] sm:$0xff] 0.0
          %303 = vst [vmem:[#allocation2 + $0x80] sm:$0xff] 0.0
          %304 = vst [vmem:[#allocation2 + $0x88] sm:$0xff] 0.0
          %305 = vst [vmem:[#allocation2 + $0x90] sm:$0xff] 0.0
          %306 = vst [vmem:[#allocation2 + $0x98] sm:$0xff] 0.0
          %307 = vst [vmem:[#allocation2 + $0xa0] sm:$0xff] 0.0
          %308 = vst [vmem:[#allocation2 + $0xa8] sm:$0xff] 0.0
          %309 = vst [vmem:[#allocation2 + $0xb0] sm:$0xff] 0.0
          %310 = vst [vmem:[#allocation2 + $0xb8] sm:$0xff] 0.0
          %311 = vst [vmem:[#allocation2 + $0xc0] sm:$0xff] 0.0
          %312 = vst [vmem:[#allocation2 + $0xc8] sm:$0xff] 0.0
          %313 = vst [vmem:[#allocation2 + $0xd0] sm:$0xff] 0.0
          %314 = vst [vmem:[#allocation2 + $0xd8] sm:$0xff] 0.0
          %315 = vst [vmem:[#allocation2 + $0xe0] sm:$0xff] 0.0
          %316 = vst [vmem:[#allocation2 + $0xe8] sm:$0xff] 0.0
          %317 = vst [vmem:[#allocation2 + $0xf0] sm:$0xff] 0.0
          %318 = vst [vmem:[#allocation2 + $0xf8] sm:$0xff] 0.0
        $region52: #{tpu_custom_call.1} parent=35 // pred_fallthru
          _
        %v319 = vld [vmem:[%s236] sm:$0xff]
        %v320 = vld [vmem:[%s236 + $0x8] sm:$0xff]
        %v321 = vld [vmem:[%s236 + $0x10] sm:$0xff]
        %v322 = vld [vmem:[%s236 + $0x18] sm:$0xff]
        %v323 = vld [vmem:[%s236 + $0x20] sm:$0xff]
        %v324 = vld [vmem:[%s236 + $0x28] sm:$0xff]
        %v325 = vld [vmem:[%s236 + $0x30] sm:$0xff]
        %v326 = vld [vmem:[%s236 + $0x38] sm:$0xff]
        %v327 = vld [vmem:[%s236 + $0x40] sm:$0xff]
        %v328 = vld [vmem:[%s236 + $0x48] sm:$0xff]
        %v329 = vld [vmem:[%s236 + $0x50] sm:$0xff]
        %v330 = vld [vmem:[%s236 + $0x58] sm:$0xff]
        %v331 = vld [vmem:[%s236 + $0x60] sm:$0xff]
        %v332 = vld [vmem:[%s236 + $0x68] sm:$0xff]
        %v333 = vld [vmem:[%s236 + $0x70] sm:$0xff]
        %v334 = vld [vmem:[%s236 + $0x78] sm:$0xff]
        %v335 = vld [vmem:[%s236 + $0x80] sm:$0xff]
        %v336 = vld [vmem:[%s236 + $0x88] sm:$0xff]
        %v337 = vld [vmem:[%s236 + $0x90] sm:$0xff]
        %v338 = vld [vmem:[%s236 + $0x98] sm:$0xff]
        %v339 = vld [vmem:[%s236 + $0xa0] sm:$0xff]
        %v340 = vld [vmem:[%s236 + $0xa8] sm:$0xff]
        %v341 = vld [vmem:[%s236 + $0xb0] sm:$0xff]
        %v342 = vld [vmem:[%s236 + $0xb8] sm:$0xff]
        %v343 = vld [vmem:[%s236 + $0xc0] sm:$0xff]
        %v344 = vld [vmem:[%s236 + $0xc8] sm:$0xff]
        %v345 = vld [vmem:[%s236 + $0xd0] sm:$0xff]
        %v346 = vld [vmem:[%s236 + $0xd8] sm:$0xff]
        %v347 = vld [vmem:[%s236 + $0xe0] sm:$0xff]
        %v348 = vld [vmem:[%s236 + $0xe8] sm:$0xff]
        %v349 = vld [vmem:[%s236 + $0xf0] sm:$0xff]
        %v350 = vld [vmem:[%s236 + $0xf8] sm:$0xff]
        %v351 = vld [vmem:[%s236 + $0x100] sm:$0xff]
        %v352 = vld [vmem:[%s236 + $0x108] sm:$0xff]
        %v353 = vld [vmem:[%s236 + $0x110] sm:$0xff]
        %v354 = vld [vmem:[%s236 + $0x118] sm:$0xff]
        %v355 = vld [vmem:[%s236 + $0x120] sm:$0xff]
        %v356 = vld [vmem:[%s236 + $0x128] sm:$0xff]
        %v357 = vld [vmem:[%s236 + $0x130] sm:$0xff]
        %v358 = vld [vmem:[%s236 + $0x138] sm:$0xff]
        %v359 = vld [vmem:[%s236 + $0x140] sm:$0xff]
        %v360 = vld [vmem:[%s236 + $0x148] sm:$0xff]
        %v361 = vld [vmem:[%s236 + $0x150] sm:$0xff]
        %v362 = vld [vmem:[%s236 + $0x158] sm:$0xff]
        %v363 = vld [vmem:[%s236 + $0x160] sm:$0xff]
        %v364 = vld [vmem:[%s236 + $0x168] sm:$0xff]
        %v365 = vld [vmem:[%s236 + $0x170] sm:$0xff]
        %v366 = vld [vmem:[%s236 + $0x178] sm:$0xff]
        %v367 = vld [vmem:[%s236 + $0x180] sm:$0xff]
        %v368 = vld [vmem:[%s236 + $0x188] sm:$0xff]
        %v369 = vld [vmem:[%s236 + $0x190] sm:$0xff]
        %v370 = vld [vmem:[%s236 + $0x198] sm:$0xff]
        %v371 = vld [vmem:[%s236 + $0x1a0] sm:$0xff]
        %v372 = vld [vmem:[%s236 + $0x1a8] sm:$0xff]
        %v373 = vld [vmem:[%s236 + $0x1b0] sm:$0xff]
        %v374 = vld [vmem:[%s236 + $0x1b8] sm:$0xff]
        %v375 = vld [vmem:[%s236 + $0x1c0] sm:$0xff]
        %v376 = vld [vmem:[%s236 + $0x1c8] sm:$0xff]
        %v377 = vld [vmem:[%s236 + $0x1d0] sm:$0xff]
        %v378 = vld [vmem:[%s236 + $0x1d8] sm:$0xff]
        %v379 = vld [vmem:[%s236 + $0x1e0] sm:$0xff]
        %v380 = vld [vmem:[%s236 + $0x1e8] sm:$0xff]
        %v381 = vld [vmem:[%s236 + $0x1f0] sm:$0xff]
        %v382 = vld [vmem:[%s236 + $0x1f8] sm:$0xff]
        %s383 = smul.u32 %s27, 256
        %v384 = vlaneseq
        %v385 = vand.u32 %v384, 127
        %v386 = vadd.s32 %v385, 128
        %v387 = vstv %s383
        %v388 = vadd.s32 %v387, %v385
        %v389 = vadd.s32 %v387, %v386
        %vm390 = vcmp.lt.s32.totalorder %v388, 500
        %vm391 = vcmp.lt.s32.totalorder %v389, 500
        %v392 = vsel %vm390, %v319, 0.0
        %v393 = vsel %vm391, %v320, 0.0
        %v394 = vsel %vm390, %v321, 0.0
        %v395 = vsel %vm391, %v322, 0.0
        %v396 = vsel %vm390, %v323, 0.0
        %v397 = vsel %vm391, %v324, 0.0
        %v398 = vsel %vm390, %v325, 0.0
        %v399 = vsel %vm391, %v326, 0.0
        %v400 = vsel %vm390, %v327, 0.0
        %v401 = vsel %vm391, %v328, 0.0
        %v402 = vsel %vm390, %v329, 0.0
        %v403 = vsel %vm391, %v330, 0.0
        %v404 = vsel %vm390, %v331, 0.0
        %v405 = vsel %vm391, %v332, 0.0
        %v406 = vsel %vm390, %v333, 0.0
        %v407 = vsel %vm391, %v334, 0.0
        %v408 = vsel %vm390, %v335, 0.0
        %v409 = vsel %vm391, %v336, 0.0
        %v410 = vsel %vm390, %v337, 0.0
        %v411 = vsel %vm391, %v338, 0.0
        %v412 = vsel %vm390, %v339, 0.0
        %v413 = vsel %vm391, %v340, 0.0
        %v414 = vsel %vm390, %v341, 0.0
        %v415 = vsel %vm391, %v342, 0.0
        %v416 = vsel %vm390, %v343, 0.0
        %v417 = vsel %vm391, %v344, 0.0
        %v418 = vsel %vm390, %v345, 0.0
        %v419 = vsel %vm391, %v346, 0.0
        %v420 = vsel %vm390, %v347, 0.0
        %v421 = vsel %vm391, %v348, 0.0
        %v422 = vsel %vm390, %v349, 0.0
        %v423 = vsel %vm391, %v350, 0.0
        %v424 = vsel %vm390, %v351, 0.0
        %v425 = vsel %vm391, %v352, 0.0
        %v426 = vsel %vm390, %v353, 0.0
        %v427 = vsel %vm391, %v354, 0.0
        %v428 = vsel %vm390, %v355, 0.0
        %v429 = vsel %vm391, %v356, 0.0
        %v430 = vsel %vm390, %v357, 0.0
        %v431 = vsel %vm391, %v358, 0.0
        %v432 = vsel %vm390, %v359, 0.0
        %v433 = vsel %vm391, %v360, 0.0
        %v434 = vsel %vm390, %v361, 0.0
        %v435 = vsel %vm391, %v362, 0.0
        %v436 = vsel %vm390, %v363, 0.0
        %v437 = vsel %vm391, %v364, 0.0
        %v438 = vsel %vm390, %v365, 0.0
        %v439 = vsel %vm391, %v366, 0.0
        %v440 = vsel %vm390, %v367, 0.0
        %v441 = vsel %vm391, %v368, 0.0
        %v442 = vsel %vm390, %v369, 0.0
        %v443 = vsel %vm391, %v370, 0.0
        %v444 = vsel %vm390, %v371, 0.0
        %v445 = vsel %vm391, %v372, 0.0
        %v446 = vsel %vm390, %v373, 0.0
        %v447 = vsel %vm391, %v374, 0.0
        %v448 = vsel %vm390, %v375, 0.0
        %v449 = vsel %vm391, %v376, 0.0
        %v450 = vsel %vm390, %v377, 0.0
        %v451 = vsel %vm391, %v378, 0.0
        %v452 = vsel %vm390, %v379, 0.0
        %v453 = vsel %vm391, %v380, 0.0
        %v454 = vsel %vm390, %v381, 0.0
        %v455 = vsel %vm391, %v382, 0.0
        %v456 = vpack.c.bf16 %v394, %v392
        %v457 = vpack.c.bf16 %v395, %v393
        %v458 = vpack.c.bf16 %v398, %v396
        %v459 = vpack.c.bf16 %v399, %v397
        %v460 = vpack.c.bf16 %v402, %v400
        %v461 = vpack.c.bf16 %v403, %v401
        %v462 = vpack.c.bf16 %v406, %v404
        %v463 = vpack.c.bf16 %v407, %v405
        %v464 = vpack.c.bf16 %v410, %v408
        %v465 = vpack.c.bf16 %v411, %v409
        %v466 = vpack.c.bf16 %v414, %v412
        %v467 = vpack.c.bf16 %v415, %v413
        %v468 = vpack.c.bf16 %v418, %v416
        %v469 = vpack.c.bf16 %v419, %v417
        %v470 = vpack.c.bf16 %v422, %v420
        %v471 = vpack.c.bf16 %v423, %v421
        %v472 = vpack.c.bf16 %v426, %v424
        %v473 = vpack.c.bf16 %v427, %v425
        %v474 = vpack.c.bf16 %v430, %v428
        %v475 = vpack.c.bf16 %v431, %v429
        %v476 = vpack.c.bf16 %v434, %v432
        %v477 = vpack.c.bf16 %v435, %v433
        %v478 = vpack.c.bf16 %v438, %v436
        %v479 = vpack.c.bf16 %v439, %v437
        %v480 = vpack.c.bf16 %v442, %v440
        %v481 = vpack.c.bf16 %v443, %v441
        %v482 = vpack.c.bf16 %v446, %v444
        %v483 = vpack.c.bf16 %v447, %v445
        %v484 = vpack.c.bf16 %v450, %v448
        %v485 = vpack.c.bf16 %v451, %v449
        %v486 = vpack.c.bf16 %v454, %v452
        %v487 = vpack.c.bf16 %v455, %v453
        %s488 = sshra.s32 %s383, 3
        %s489 = sand.u32 %s383, 7
        %s490 = smul.addr %s488, 4
        %s491 = scalar_lea.vmem [#allocation6], %s490
        %v492 = vld [vmem:[%s491] sm:$0xf]
        %v493 = vld [vmem:[%s491 + $0x4] sm:$0xf]
        %v494 = vld [vmem:[%s491 + $0x8] sm:$0xf]
        %v495 = vld [vmem:[%s491 + $0xc] sm:$0xf]
        %v496 = vld [vmem:[%s491 + $0x10] sm:$0xf]
        %v497 = vld [vmem:[%s491 + $0x14] sm:$0xf]
        %v498 = vld [vmem:[%s491 + $0x18] sm:$0xf]
        %v499 = vld [vmem:[%s491 + $0x1c] sm:$0xf]
        %v500 = vld [vmem:[%s491 + $0x20] sm:$0xf]
        %v501 = vld [vmem:[%s491 + $0x24] sm:$0xf]
        %v502 = vld [vmem:[%s491 + $0x28] sm:$0xf]
        %v503 = vld [vmem:[%s491 + $0x2c] sm:$0xf]
        %v504 = vld [vmem:[%s491 + $0x30] sm:$0xf]
        %v505 = vld [vmem:[%s491 + $0x34] sm:$0xf]
        %v506 = vld [vmem:[%s491 + $0x38] sm:$0xf]
        %v507 = vld [vmem:[%s491 + $0x3c] sm:$0xf]
        %v508 = vld [vmem:[%s491 + $0x40] sm:$0xf]
        %v509 = vld [vmem:[%s491 + $0x44] sm:$0xf]
        %v510 = vld [vmem:[%s491 + $0x48] sm:$0xf]
        %v511 = vld [vmem:[%s491 + $0x4c] sm:$0xf]
        %v512 = vld [vmem:[%s491 + $0x50] sm:$0xf]
        %v513 = vld [vmem:[%s491 + $0x54] sm:$0xf]
        %v514 = vld [vmem:[%s491 + $0x58] sm:$0xf]
        %v515 = vld [vmem:[%s491 + $0x5c] sm:$0xf]
        %v516 = vld [vmem:[%s491 + $0x60] sm:$0xf]
        %v517 = vld [vmem:[%s491 + $0x64] sm:$0xf]
        %v518 = vld [vmem:[%s491 + $0x68] sm:$0xf]
        %v519 = vld [vmem:[%s491 + $0x6c] sm:$0xf]
        %v520 = vld [vmem:[%s491 + $0x70] sm:$0xf]
        %v521 = vld [vmem:[%s491 + $0x74] sm:$0xf]
        %v522 = vld [vmem:[%s491 + $0x78] sm:$0xf]
        %v523 = vld [vmem:[%s491 + $0x7c] sm:$0xf]
        %v524 = vld [vmem:[#allocation2] sm:$0xff]
        %v525 = vld [vmem:[#allocation2 + $0x8] sm:$0xff]
        %v526 = vld [vmem:[#allocation2 + $0x10] sm:$0xff]
        %v527 = vld [vmem:[#allocation2 + $0x18] sm:$0xff]
        %v528 = vld [vmem:[#allocation2 + $0x20] sm:$0xff]
        %v529 = vld [vmem:[#allocation2 + $0x28] sm:$0xff]
        %v530 = vld [vmem:[#allocation2 + $0x30] sm:$0xff]
        %v531 = vld [vmem:[#allocation2 + $0x38] sm:$0xff]
        %v532 = vld [vmem:[#allocation2 + $0x40] sm:$0xff]
        %v533 = vld [vmem:[#allocation2 + $0x48] sm:$0xff]
        %v534 = vld [vmem:[#allocation2 + $0x50] sm:$0xff]
        %v535 = vld [vmem:[#allocation2 + $0x58] sm:$0xff]
        %v536 = vld [vmem:[#allocation2 + $0x60] sm:$0xff]
        %v537 = vld [vmem:[#allocation2 + $0x68] sm:$0xff]
        %v538 = vld [vmem:[#allocation2 + $0x70] sm:$0xff]
        %v539 = vld [vmem:[#allocation2 + $0x78] sm:$0xff]
        %v540 = vld [vmem:[#allocation2 + $0x80] sm:$0xff]
        %v541 = vld [vmem:[#allocation2 + $0x88] sm:$0xff]
        %v542 = vld [vmem:[#allocation2 + $0x90] sm:$0xff]
        %v543 = vld [vmem:[#allocation2 + $0x98] sm:$0xff]
        %v544 = vld [vmem:[#allocation2 + $0xa0] sm:$0xff]
        %v545 = vld [vmem:[#allocation2 + $0xa8] sm:$0xff]
        %v546 = vld [vmem:[#allocation2 + $0xb0] sm:$0xff]
        %v547 = vld [vmem:[#allocation2 + $0xb8] sm:$0xff]
        %v548 = vld [vmem:[#allocation2 + $0xc0] sm:$0xff]
        %v549 = vld [vmem:[#allocation2 + $0xc8] sm:$0xff]
        %v550 = vld [vmem:[#allocation2 + $0xd0] sm:$0xff]
        %v551 = vld [vmem:[#allocation2 + $0xd8] sm:$0xff]
        %v552 = vld [vmem:[#allocation2 + $0xe0] sm:$0xff]
        %v553 = vld [vmem:[#allocation2 + $0xe8] sm:$0xff]
        %v554 = vld [vmem:[#allocation2 + $0xf0] sm:$0xff]
        %v555 = vld [vmem:[#allocation2 + $0xf8] sm:$0xff]
        %v588 = vunpack.c.l.b16 %v492
        %v589 = vunpack.c.l.b16 %v493
        %v590 = vunpack.c.l.b16 %v494
        %v591 = vunpack.c.l.b16 %v495
        %v592 = vunpack.c.l.b16 %v496
        %v593 = vunpack.c.l.b16 %v497
        %v594 = vunpack.c.l.b16 %v498
        %v595 = vunpack.c.l.b16 %v499
        %v596 = vunpack.c.l.b16 %v500
        %v597 = vunpack.c.l.b16 %v501
        %v598 = vunpack.c.l.b16 %v502
        %v599 = vunpack.c.l.b16 %v503
        %v600 = vunpack.c.l.b16 %v504
        %v601 = vunpack.c.l.b16 %v505
        %v602 = vunpack.c.l.b16 %v506
        %v603 = vunpack.c.l.b16 %v507
        %v604 = vunpack.c.l.b16 %v508
        %v605 = vunpack.c.l.b16 %v509
        %v606 = vunpack.c.l.b16 %v510
        %v607 = vunpack.c.l.b16 %v511
        %v608 = vunpack.c.l.b16 %v512
        %v609 = vunpack.c.l.b16 %v513
        %v610 = vunpack.c.l.b16 %v514
        %v611 = vunpack.c.l.b16 %v515
        %v612 = vunpack.c.l.b16 %v516
        %v613 = vunpack.c.l.b16 %v517
        %v614 = vunpack.c.l.b16 %v518
        %v615 = vunpack.c.l.b16 %v519
        %v616 = vunpack.c.l.b16 %v520
        %v617 = vunpack.c.l.b16 %v521
        %v618 = vunpack.c.l.b16 %v522
        %v619 = vunpack.c.l.b16 %v523
        %v620 = vpack.c.b16 %v589, %v588
        %v621 = vpack.c.b16 %v591, %v590
        %v622 = vpack.c.b16 %v593, %v592
        %v623 = vpack.c.b16 %v595, %v594
        %v624 = vpack.c.b16 %v597, %v596
        %v625 = vpack.c.b16 %v599, %v598
        %v626 = vpack.c.b16 %v601, %v600
        %v627 = vpack.c.b16 %v603, %v602
        %v628 = vpack.c.b16 %v605, %v604
        %v629 = vpack.c.b16 %v607, %v606
        %v630 = vpack.c.b16 %v609, %v608
        %v631 = vpack.c.b16 %v611, %v610
        %v632 = vpack.c.b16 %v613, %v612
        %v633 = vpack.c.b16 %v615, %v614
        %v634 = vpack.c.b16 %v617, %v616
        %v635 = vpack.c.b16 %v619, %v618
        %652 = vmatprep.subr.bf16.mxu0 0
        %653 = vmatpush1.bf16.msra.mxu0 %v620
        %654 = vmatprep.subr.bf16.mxu0 0
        %655 = vmatpush1.bf16.msra.mxu0 %v621
        %656 = vmatprep.subr.bf16.mxu0 0
        %657 = vmatpush1.bf16.msra.mxu0 %v622
        %658 = vmatprep.subr.bf16.mxu0 0
        %659 = vmatpush1.bf16.msra.mxu0 %v623
        %660 = vmatprep.subr.bf16.mxu0 0
        %661 = vmatpush1.bf16.msra.mxu0 %v624
        %662 = vmatprep.subr.bf16.mxu0 0
        %663 = vmatpush1.bf16.msra.mxu0 %v625
        %664 = vmatprep.subr.bf16.mxu0 0
        %665 = vmatpush1.bf16.msra.mxu0 %v626
        %666 = vmatprep.subr.bf16.mxu0 0
        %667 = vmatpush1.bf16.msra.mxu0 %v627
        %668 = vmatprep.subr.bf16.mxu0 0
        %669 = vmatpush1.bf16.msra.mxu0 %v628
        %670 = vmatprep.subr.bf16.mxu0 0
        %671 = vmatpush1.bf16.msra.mxu0 %v629
        %672 = vmatprep.subr.bf16.mxu0 0
        %673 = vmatpush1.bf16.msra.mxu0 %v630
        %674 = vmatprep.subr.bf16.mxu0 0
        %675 = vmatpush1.bf16.msra.mxu0 %v631
        %676 = vmatprep.subr.bf16.mxu0 0
        %677 = vmatpush1.bf16.msra.mxu0 %v632
        %678 = vmatprep.subr.bf16.mxu0 0
        %679 = vmatpush1.bf16.msra.mxu0 %v633
        %680 = vmatprep.subr.bf16.mxu0 0
        %681 = vmatpush1.bf16.msra.mxu0 %v634
        %682 = vmatprep.subr.bf16.mxu0 0
        %683 = vmatpush1.bf16.msra.mxu0 %v635
        %684 = vmatprep.mubr.bf16.mxu0 %v457
        %685 = vmatmul.mubr.bf16.gmra.mrb[0].mxu0 %v456
        %v686 = vpop.f32.mrb[0].mxu0
        %v687 = vadd.f32 0.0, %v686
        %v688 = vpop.f32.mrb[0].mxu0
        %v689 = vpop.f32.mrb[0].mxu0
        %v690 = vadd.f32 0.0, %v689
        %v691 = vpop.f32.mrb[0].mxu0
        %692 = vmatprep.mubr.bf16.mxu0 %v459
        %693 = vmatmul.mubr.bf16.gmra.mrb[0].mxu0 %v458
        %v694 = vpop.f32.mrb[0].mxu0
        %v695 = vadd.f32 0.0, %v694
        %v696 = vpop.f32.mrb[0].mxu0
        %v697 = vpop.f32.mrb[0].mxu0
        %v698 = vadd.f32 0.0, %v697
        %v699 = vpop.f32.mrb[0].mxu0
        %700 = vmatprep.mubr.bf16.mxu0 %v461
        %701 = vmatmul.mubr.bf16.gmra.mrb[0].mxu0 %v460
        %v702 = vpop.f32.mrb[0].mxu0
        %v703 = vadd.f32 0.0, %v702
        %v704 = vpop.f32.mrb[0].mxu0
        %v705 = vpop.f32.mrb[0].mxu0
        %v706 = vadd.f32 0.0, %v705
        %v707 = vpop.f32.mrb[0].mxu0
        %708 = vmatprep.mubr.bf16.mxu0 %v463
        %709 = vmatmul.mubr.bf16.gmra.mrb[0].mxu0 %v462
        %v710 = vpop.f32.mrb[0].mxu0
        %v711 = vadd.f32 0.0, %v710
        %v712 = vpop.f32.mrb[0].mxu0
        %v713 = vpop.f32.mrb[0].mxu0
        %v714 = vadd.f32 0.0, %v713
        %v715 = vpop.f32.mrb[0].mxu0
        %716 = vmatprep.mubr.bf16.mxu0 %v465
        %717 = vmatmul.mubr.bf16.gmra.mrb[0].mxu0 %v464
        %v718 = vpop.f32.mrb[0].mxu0
        %v719 = vadd.f32 0.0, %v718
        %v720 = vpop.f32.mrb[0].mxu0
        %v721 = vpop.f32.mrb[0].mxu0
        %v722 = vadd.f32 0.0, %v721
        %v723 = vpop.f32.mrb[0].mxu0
        %724 = vmatprep.mubr.bf16.mxu0 %v467
        %725 = vmatmul.mubr.bf16.gmra.mrb[0].mxu0 %v466
        %v726 = vpop.f32.mrb[0].mxu0
        %v727 = vadd.f32 0.0, %v726
        %v728 = vpop.f32.mrb[0].mxu0
        %v729 = vpop.f32.mrb[0].mxu0
        %v730 = vadd.f32 0.0, %v729
        %v731 = vpop.f32.mrb[0].mxu0
        %732 = vmatprep.mubr.bf16.mxu0 %v469
        %733 = vmatmul.mubr.bf16.gmra.mrb[0].mxu0 %v468
        %v734 = vpop.f32.mrb[0].mxu0
        %v735 = vadd.f32 0.0, %v734
        %v736 = vpop.f32.mrb[0].mxu0
        %v737 = vpop.f32.mrb[0].mxu0
        %v738 = vadd.f32 0.0, %v737
        %v739 = vpop.f32.mrb[0].mxu0
        %740 = vmatprep.mubr.bf16.mxu0 %v471
        %741 = vmatmul.mubr.bf16.gmra.mrb[0].mxu0 %v470
        %v742 = vpop.f32.mrb[0].mxu0
        %v743 = vadd.f32 0.0, %v742
        %v744 = vpop.f32.mrb[0].mxu0
        %v745 = vpop.f32.mrb[0].mxu0
        %v746 = vadd.f32 0.0, %v745
        %v747 = vpop.f32.mrb[0].mxu0
        %748 = vmatprep.mubr.bf16.mxu0 %v473
        %749 = vmatmul.mubr.bf16.gmra.mrb[0].mxu0 %v472
        %v750 = vpop.f32.mrb[0].mxu0
        %v751 = vadd.f32 0.0, %v750
        %v752 = vpop.f32.mrb[0].mxu0
        %v753 = vpop.f32.mrb[0].mxu0
        %v754 = vadd.f32 0.0, %v753
        %v755 = vpop.f32.mrb[0].mxu0
        %756 = vmatprep.mubr.bf16.mxu0 %v475
        %757 = vmatmul.mubr.bf16.gmra.mrb[0].mxu0 %v474
        %v758 = vpop.f32.mrb[0].mxu0
        %v759 = vadd.f32 0.0, %v758
        %v760 = vpop.f32.mrb[0].mxu0
        %v761 = vpop.f32.mrb[0].mxu0
        %v762 = vadd.f32 0.0, %v761
        %v763 = vpop.f32.mrb[0].mxu0
        %764 = vmatprep.mubr.bf16.mxu0 %v477
        %765 = vmatmul.mubr.bf16.gmra.mrb[0].mxu0 %v476
        %v766 = vpop.f32.mrb[0].mxu0
        %v767 = vadd.f32 0.0, %v766
        %v768 = vpop.f32.mrb[0].mxu0
        %v769 = vpop.f32.mrb[0].mxu0
        %v770 = vadd.f32 0.0, %v769
        %v771 = vpop.f32.mrb[0].mxu0
        %772 = vmatprep.mubr.bf16.mxu0 %v479
        %773 = vmatmul.mubr.bf16.gmra.mrb[0].mxu0 %v478
        %v774 = vpop.f32.mrb[0].mxu0
        %v775 = vadd.f32 0.0, %v774
        %v776 = vpop.f32.mrb[0].mxu0
        %v777 = vpop.f32.mrb[0].mxu0
        %v778 = vadd.f32 0.0, %v777
        %v779 = vpop.f32.mrb[0].mxu0
        %780 = vmatprep.mubr.bf16.mxu0 %v481
        %781 = vmatmul.mubr.bf16.gmra.mrb[0].mxu0 %v480
        %v782 = vpop.f32.mrb[0].mxu0
        %v783 = vadd.f32 0.0, %v782
        %v784 = vpop.f32.mrb[0].mxu0
        %v785 = vpop.f32.mrb[0].mxu0
        %v786 = vadd.f32 0.0, %v785
        %v787 = vpop.f32.mrb[0].mxu0
        %788 = vmatprep.mubr.bf16.mxu0 %v483
        %789 = vmatmul.mubr.bf16.gmra.mrb[0].mxu0 %v482
        %v790 = vpop.f32.mrb[0].mxu0
        %v791 = vadd.f32 0.0, %v790
        %v792 = vpop.f32.mrb[0].mxu0
        %v793 = vpop.f32.mrb[0].mxu0
        %v794 = vadd.f32 0.0, %v793
        %v795 = vpop.f32.mrb[0].mxu0
        %796 = vmatprep.mubr.bf16.mxu0 %v485
        %797 = vmatmul.mubr.bf16.gmra.mrb[0].mxu0 %v484
        %v798 = vpop.f32.mrb[0].mxu0
        %v799 = vadd.f32 0.0, %v798
        %v800 = vpop.f32.mrb[0].mxu0
        %v801 = vpop.f32.mrb[0].mxu0
        %v802 = vadd.f32 0.0, %v801
        %v803 = vpop.f32.mrb[0].mxu0
        %804 = vmatprep.mubr.bf16.mxu0 %v487
        %805 = vmatmul.mubr.bf16.gmra.mrb[0].mxu0 %v486
        %v806 = vpop.f32.mrb[0].mxu0
        %v807 = vadd.f32 0.0, %v806
        %v808 = vpop.f32.mrb[0].mxu0
        %v809 = vpop.f32.mrb[0].mxu0
        %v810 = vadd.f32 0.0, %v809
        %v811 = vpop.f32.mrb[0].mxu0
        %812 = vdwg.mxu0
        %v813 = vadd.f32 %v524, %v687
        %v814 = vadd.f32 %v525, %v690
        %v815 = vadd.f32 %v526, %v695
        %v816 = vadd.f32 %v527, %v698
        %v817 = vadd.f32 %v528, %v703
        %v818 = vadd.f32 %v529, %v706
        %v819 = vadd.f32 %v530, %v711
        %v820 = vadd.f32 %v531, %v714
        %v821 = vadd.f32 %v532, %v719
        %v822 = vadd.f32 %v533, %v722
        %v823 = vadd.f32 %v534, %v727
        %v824 = vadd.f32 %v535, %v730
        %v825 = vadd.f32 %v536, %v735
        %v826 = vadd.f32 %v537, %v738
        %v827 = vadd.f32 %v538, %v743
        %v828 = vadd.f32 %v539, %v746
        %v829 = vadd.f32 %v540, %v751
        %v830 = vadd.f32 %v541, %v754
        %v831 = vadd.f32 %v542, %v759
        %v832 = vadd.f32 %v543, %v762
        %v833 = vadd.f32 %v544, %v767
        %v834 = vadd.f32 %v545, %v770
        %v835 = vadd.f32 %v546, %v775
        %v836 = vadd.f32 %v547, %v778
        %v837 = vadd.f32 %v548, %v783
        %v838 = vadd.f32 %v549, %v786
        %v839 = vadd.f32 %v550, %v791
        %v840 = vadd.f32 %v551, %v794
        %v841 = vadd.f32 %v552, %v799
        %v842 = vadd.f32 %v553, %v802
        %v843 = vadd.f32 %v554, %v807
        %v844 = vadd.f32 %v555, %v810
        %845 = vst [vmem:[#allocation2] sm:$0xff] %v813
        %846 = vst [vmem:[#allocation2 + $0x8] sm:$0xff] %v814
        %847 = vst [vmem:[#allocation2 + $0x10] sm:$0xff] %v815
        %848 = vst [vmem:[#allocation2 + $0x18] sm:$0xff] %v816
        %849 = vst [vmem:[#allocation2 + $0x20] sm:$0xff] %v817
        %850 = vst [vmem:[#allocation2 + $0x28] sm:$0xff] %v818
        %851 = vst [vmem:[#allocation2 + $0x30] sm:$0xff] %v819
        %852 = vst [vmem:[#allocation2 + $0x38] sm:$0xff] %v820
        %853 = vst [vmem:[#allocation2 + $0x40] sm:$0xff] %v821
        %854 = vst [vmem:[#allocation2 + $0x48] sm:$0xff] %v822
        %855 = vst [vmem:[#allocation2 + $0x50] sm:$0xff] %v823
        %856 = vst [vmem:[#allocation2 + $0x58] sm:$0xff] %v824
        %857 = vst [vmem:[#allocation2 + $0x60] sm:$0xff] %v825
        %858 = vst [vmem:[#allocation2 + $0x68] sm:$0xff] %v826
        %859 = vst [vmem:[#allocation2 + $0x70] sm:$0xff] %v827
        %860 = vst [vmem:[#allocation2 + $0x78] sm:$0xff] %v828
        %861 = vst [vmem:[#allocation2 + $0x80] sm:$0xff] %v829
        %862 = vst [vmem:[#allocation2 + $0x88] sm:$0xff] %v830
        %863 = vst [vmem:[#allocation2 + $0x90] sm:$0xff] %v831
        %864 = vst [vmem:[#allocation2 + $0x98] sm:$0xff] %v832
        %865 = vst [vmem:[#allocation2 + $0xa0] sm:$0xff] %v833
        %866 = vst [vmem:[#allocation2 + $0xa8] sm:$0xff] %v834
        %867 = vst [vmem:[#allocation2 + $0xb0] sm:$0xff] %v835
        %868 = vst [vmem:[#allocation2 + $0xb8] sm:$0xff] %v836
        %869 = vst [vmem:[#allocation2 + $0xc0] sm:$0xff] %v837
        %870 = vst [vmem:[#allocation2 + $0xc8] sm:$0xff] %v838
        %871 = vst [vmem:[#allocation2 + $0xd0] sm:$0xff] %v839
        %872 = vst [vmem:[#allocation2 + $0xd8] sm:$0xff] %v840
        %873 = vst [vmem:[#allocation2 + $0xe0] sm:$0xff] %v841
        %874 = vst [vmem:[#allocation2 + $0xe8] sm:$0xff] %v842
        %875 = vst [vmem:[#allocation2 + $0xf0] sm:$0xff] %v843
        %876 = vst [vmem:[#allocation2 + $0xf8] sm:$0xff] %v844
        %p877 = scmp.eq.s32.totalorder %s27, 1
        // Predicated region
        $region53: #{tpu_custom_call.1} parent=35 // pred_check
          %p878 = pneg %p877
        $region54: #{tpu_custom_call.1} parent=35 // pred_check_branch
          %880 = sbr.rel (%p878) target = $region56
        $region55: #{tpu_custom_call.1} parent=35 // pred_region
          %v881 = vld [vmem:[#allocation2] sm:$0xff]
          %v882 = vld [vmem:[#allocation2 + $0x8] sm:$0xff]
          %v883 = vld [vmem:[#allocation2 + $0x10] sm:$0xff]
          %v884 = vld [vmem:[#allocation2 + $0x18] sm:$0xff]
          %v885 = vld [vmem:[#allocation2 + $0x20] sm:$0xff]
          %v886 = vld [vmem:[#allocation2 + $0x28] sm:$0xff]
          %v887 = vld [vmem:[#allocation2 + $0x30] sm:$0xff]
          %v888 = vld [vmem:[#allocation2 + $0x38] sm:$0xff]
          %v889 = vld [vmem:[#allocation2 + $0x40] sm:$0xff]
          %v890 = vld [vmem:[#allocation2 + $0x48] sm:$0xff]
          %v891 = vld [vmem:[#allocation2 + $0x50] sm:$0xff]
          %v892 = vld [vmem:[#allocation2 + $0x58] sm:$0xff]
          %v893 = vld [vmem:[#allocation2 + $0x60] sm:$0xff]
          %v894 = vld [vmem:[#allocation2 + $0x68] sm:$0xff]
          %v895 = vld [vmem:[#allocation2 + $0x70] sm:$0xff]
          %v896 = vld [vmem:[#allocation2 + $0x78] sm:$0xff]
          %v897 = vld [vmem:[#allocation2 + $0x80] sm:$0xff]
          %v898 = vld [vmem:[#allocation2 + $0x88] sm:$0xff]
          %v899 = vld [vmem:[#allocation2 + $0x90] sm:$0xff]
          %v900 = vld [vmem:[#allocation2 + $0x98] sm:$0xff]
          %v901 = vld [vmem:[#allocation2 + $0xa0] sm:$0xff]
          %v902 = vld [vmem:[#allocation2 + $0xa8] sm:$0xff]
          %v903 = vld [vmem:[#allocation2 + $0xb0] sm:$0xff]
          %v904 = vld [vmem:[#allocation2 + $0xb8] sm:$0xff]
          %v905 = vld [vmem:[#allocation2 + $0xc0] sm:$0xff]
          %v906 = vld [vmem:[#allocation2 + $0xc8] sm:$0xff]
          %v907 = vld [vmem:[#allocation2 + $0xd0] sm:$0xff]
          %v908 = vld [vmem:[#allocation2 + $0xd8] sm:$0xff]
          %v909 = vld [vmem:[#allocation2 + $0xe0] sm:$0xff]
          %v910 = vld [vmem:[#allocation2 + $0xe8] sm:$0xff]
          %v911 = vld [vmem:[#allocation2 + $0xf0] sm:$0xff]
          %v912 = vld [vmem:[#allocation2 + $0xf8] sm:$0xff]
          %v913 = vpack.c.bf16 %v882, %v881
          %v914 = vpack.c.bf16 %v884, %v883
          %v915 = vpack.c.bf16 %v886, %v885
          %v916 = vpack.c.bf16 %v888, %v887
          %v917 = vpack.c.bf16 %v890, %v889
          %v918 = vpack.c.bf16 %v892, %v891
          %v919 = vpack.c.bf16 %v894, %v893
          %v920 = vpack.c.bf16 %v896, %v895
          %v921 = vpack.c.bf16 %v898, %v897
          %v922 = vpack.c.bf16 %v900, %v899
          %v923 = vpack.c.bf16 %v902, %v901
          %v924 = vpack.c.bf16 %v904, %v903
          %v925 = vpack.c.bf16 %v906, %v905
          %v926 = vpack.c.bf16 %v908, %v907
          %v927 = vpack.c.bf16 %v910, %v909
          %v928 = vpack.c.bf16 %v912, %v911
          %v929 = vld [vmem:[#allocation8] sm:$0xff]
          %v930 = vld [vmem:[#allocation8 + $0x8] sm:$0xff]
          %v931 = vld [vmem:[#allocation8 + $0x10] sm:$0xff]
          %v932 = vld [vmem:[#allocation8 + $0x18] sm:$0xff]
          %v933 = vld [vmem:[#allocation8 + $0x20] sm:$0xff]
          %v934 = vld [vmem:[#allocation8 + $0x28] sm:$0xff]
          %v935 = vld [vmem:[#allocation8 + $0x30] sm:$0xff]
          %v936 = vld [vmem:[#allocation8 + $0x38] sm:$0xff]
          %v937 = vld [vmem:[#allocation8 + $0x40] sm:$0xff]
          %v938 = vld [vmem:[#allocation8 + $0x48] sm:$0xff]
          %v939 = vld [vmem:[#allocation8 + $0x50] sm:$0xff]
          %v940 = vld [vmem:[#allocation8 + $0x58] sm:$0xff]
          %v941 = vld [vmem:[#allocation8 + $0x60] sm:$0xff]
          %v942 = vld [vmem:[#allocation8 + $0x68] sm:$0xff]
          %v943 = vld [vmem:[#allocation8 + $0x70] sm:$0xff]
          %v944 = vld [vmem:[#allocation8 + $0x78] sm:$0xff]
          %v945 = vld [vmem:[%s3] sm:$0x3]
          %v947 = vlaneseq
          %v948 = vshrl.u32 %v947, 7
          %v949 = vsub.s32 0, %v948
          %v950 = vrot.slane %v945, %v949
          %v951 = vlaneseq
          %v952 = vshrl.u32 %v951, 7
          %v953 = vsub.s32 1, %v952
          %v954 = vrot.slane %v945, %v953
          %v973 = vunpack.c.l.b16 %v929
          %v974 = vunpack.c.h.b16 %v929
          %v975 = vunpack.c.l.b16 %v930
          %v976 = vunpack.c.h.b16 %v930
          %v977 = vunpack.c.l.b16 %v931
          %v978 = vunpack.c.h.b16 %v931
          %v979 = vunpack.c.l.b16 %v932
          %v980 = vunpack.c.h.b16 %v932
          %v981 = vunpack.c.l.b16 %v933
          %v982 = vunpack.c.h.b16 %v933
          %v983 = vunpack.c.l.b16 %v934
          %v984 = vunpack.c.h.b16 %v934
          %v985 = vunpack.c.l.b16 %v935
          %v986 = vunpack.c.h.b16 %v935
          %v987 = vunpack.c.l.b16 %v936
          %v988 = vunpack.c.h.b16 %v936
          %v989 = vunpack.c.l.b16 %v937
          %v990 = vunpack.c.h.b16 %v937
          %v991 = vunpack.c.l.b16 %v938
          %v992 = vunpack.c.h.b16 %v938
          %v993 = vunpack.c.l.b16 %v939
          %v994 = vunpack.c.h.b16 %v939
          %v995 = vunpack.c.l.b16 %v940
          %v996 = vunpack.c.h.b16 %v940
          %v997 = vunpack.c.l.b16 %v941
          %v998 = vunpack.c.h.b16 %v941
          %v999 = vunpack.c.l.b16 %v942
          %v1000 = vunpack.c.h.b16 %v942
          %v1001 = vunpack.c.l.b16 %v943
          %v1002 = vunpack.c.h.b16 %v943
          %v1003 = vunpack.c.l.b16 %v944
          %v1004 = vunpack.c.h.b16 %v944
          %v1005 = vpack.c.b16 %v975, %v973
          %v1006 = vpack.c.b16 %v976, %v974
          %v1007 = vpack.c.b16 %v979, %v977
          %v1008 = vpack.c.b16 %v980, %v978
          %v1009 = vpack.c.b16 %v983, %v981
          %v1010 = vpack.c.b16 %v984, %v982
          %v1011 = vpack.c.b16 %v987, %v985
          %v1012 = vpack.c.b16 %v988, %v986
          %v1013 = vpack.c.b16 %v991, %v989
          %v1014 = vpack.c.b16 %v992, %v990
          %v1015 = vpack.c.b16 %v995, %v993
          %v1016 = vpack.c.b16 %v996, %v994
          %v1017 = vpack.c.b16 %v999, %v997
          %v1018 = vpack.c.b16 %v1000, %v998
          %v1019 = vpack.c.b16 %v1003, %v1001
          %v1020 = vpack.c.b16 %v1004, %v1002
          %1037 = vmatprep.subr.bf16.mxu0 %v1006
          %1038 = vmatpush1.bf16.msra.mxu0 %v1005
          %1039 = vmatprep.subr.bf16.mxu0 %v1008
          %1040 = vmatpush1.bf16.msra.mxu0 %v1007
          %1041 = vmatprep.subr.bf16.mxu0 %v1010
          %1042 = vmatpush1.bf16.msra.mxu0 %v1009
          %1043 = vmatprep.subr.bf16.mxu0 %v1012
          %1044 = vmatpush1.bf16.msra.mxu0 %v1011
          %1045 = vmatprep.subr.bf16.mxu0 %v1014
          %1046 = vmatpush1.bf16.msra.mxu0 %v1013
          %1047 = vmatprep.subr.bf16.mxu0 %v1016
          %1048 = vmatpush1.bf16.msra.mxu0 %v1015
          %1049 = vmatprep.subr.bf16.mxu0 %v1018
          %1050 = vmatpush1.bf16.msra.mxu0 %v1017
          %1051 = vmatprep.subr.bf16.mxu0 %v1020
          %1052 = vmatpush1.bf16.msra.mxu0 %v1019
          %1053 = vmatprep.subr.bf16.mxu0 0
          %1054 = vmatpush1.bf16.msra.mxu0 0
          %1055 = vmatprep.subr.bf16.mxu0 0
          %1056 = vmatpush1.bf16.msra.mxu0 0
          %1057 = vmatprep.subr.bf16.mxu0 0
          %1058 = vmatpush1.bf16.msra.mxu0 0
          %1059 = vmatprep.subr.bf16.mxu0 0
          %1060 = vmatpush1.bf16.msra.mxu0 0
          %1061 = vmatprep.subr.bf16.mxu0 0
          %1062 = vmatpush1.bf16.msra.mxu0 0
          %1063 = vmatprep.subr.bf16.mxu0 0
          %1064 = vmatpush1.bf16.msra.mxu0 0
          %1065 = vmatprep.subr.bf16.mxu0 0
          %1066 = vmatpush1.bf16.msra.mxu0 0
          %1067 = vmatprep.subr.bf16.mxu0 0
          %1068 = vmatpush1.bf16.msra.mxu0 0
          %1069 = vmatprep.mubr.bf16.mxu0 0
          %1070 = vmatmul.mubr.bf16.gmra.mrb[0].mxu0 %v913
          %v1071 = vpop.f32.mrb[0].mxu0
          %v1072 = vadd.f32 %v950, %v1071
          %v1073 = vpop.f32.mrb[0].mxu0
          %v1074 = vadd.f32 %v954, %v1073
          %v1075 = vpop.f32.mrb[0].mxu0
          %v1076 = vadd.f32 %v950, %v1075
          %v1077 = vpop.f32.mrb[0].mxu0
          %v1078 = vadd.f32 %v954, %v1077
          %1079 = vmatprep.mubr.bf16.mxu0 0
          %1080 = vmatmul.mubr.bf16.gmra.mrb[0].mxu0 %v914
          %v1081 = vpop.f32.mrb[0].mxu0
          %v1082 = vadd.f32 %v950, %v1081
          %v1083 = vpop.f32.mrb[0].mxu0
          %v1084 = vadd.f32 %v954, %v1083
          %v1085 = vpop.f32.mrb[0].mxu0
          %v1086 = vadd.f32 %v950, %v1085
          %v1087 = vpop.f32.mrb[0].mxu0
          %v1088 = vadd.f32 %v954, %v1087
          %1089 = vmatprep.mubr.bf16.mxu0 0
          %1090 = vmatmul.mubr.bf16.gmra.mrb[0].mxu0 %v915
          %v1091 = vpop.f32.mrb[0].mxu0
          %v1092 = vadd.f32 %v950, %v1091
          %v1093 = vpop.f32.mrb[0].mxu0
          %v1094 = vadd.f32 %v954, %v1093
          %v1095 = vpop.f32.mrb[0].mxu0
          %v1096 = vadd.f32 %v950, %v1095
          %v1097 = vpop.f32.mrb[0].mxu0
          %v1098 = vadd.f32 %v954, %v1097
          %1099 = vmatprep.mubr.bf16.mxu0 0
          %1100 = vmatmul.mubr.bf16.gmra.mrb[0].mxu0 %v916
          %v1101 = vpop.f32.mrb[0].mxu0
          %v1102 = vadd.f32 %v950, %v1101
          %v1103 = vpop.f32.mrb[0].mxu0
          %v1104 = vadd.f32 %v954, %v1103
          %v1105 = vpop.f32.mrb[0].mxu0
          %v1106 = vadd.f32 %v950, %v1105
          %v1107 = vpop.f32.mrb[0].mxu0
          %v1108 = vadd.f32 %v954, %v1107
          %1109 = vmatprep.mubr.bf16.mxu0 0
          %1110 = vmatmul.mubr.bf16.gmra.mrb[0].mxu0 %v917
          %v1111 = vpop.f32.mrb[0].mxu0
          %v1112 = vadd.f32 %v950, %v1111
          %v1113 = vpop.f32.mrb[0].mxu0
          %v1114 = vadd.f32 %v954, %v1113
          %v1115 = vpop.f32.mrb[0].mxu0
          %v1116 = vadd.f32 %v950, %v1115
          %v1117 = vpop.f32.mrb[0].mxu0
          %v1118 = vadd.f32 %v954, %v1117
          %1119 = vmatprep.mubr.bf16.mxu0 0
          %1120 = vmatmul.mubr.bf16.gmra.mrb[0].mxu0 %v918
          %v1121 = vpop.f32.mrb[0].mxu0
          %v1122 = vadd.f32 %v950, %v1121
          %v1123 = vpop.f32.mrb[0].mxu0
          %v1124 = vadd.f32 %v954, %v1123
          %v1125 = vpop.f32.mrb[0].mxu0
          %v1126 = vadd.f32 %v950, %v1125
          %v1127 = vpop.f32.mrb[0].mxu0
          %v1128 = vadd.f32 %v954, %v1127
          %1129 = vmatprep.mubr.bf16.mxu0 0
          %1130 = vmatmul.mubr.bf16.gmra.mrb[0].mxu0 %v919
          %v1131 = vpop.f32.mrb[0].mxu0
          %v1132 = vadd.f32 %v950, %v1131
          %v1133 = vpop.f32.mrb[0].mxu0
          %v1134 = vadd.f32 %v954, %v1133
          %v1135 = vpop.f32.mrb[0].mxu0
          %v1136 = vadd.f32 %v950, %v1135
          %v1137 = vpop.f32.mrb[0].mxu0
          %v1138 = vadd.f32 %v954, %v1137
          %1139 = vmatprep.mubr.bf16.mxu0 0
          %1140 = vmatmul.mubr.bf16.gmra.mrb[0].mxu0 %v920
          %v1141 = vpop.f32.mrb[0].mxu0
          %v1142 = vadd.f32 %v950, %v1141
          %v1143 = vpop.f32.mrb[0].mxu0
          %v1144 = vadd.f32 %v954, %v1143
          %v1145 = vpop.f32.mrb[0].mxu0
          %v1146 = vadd.f32 %v950, %v1145
          %v1147 = vpop.f32.mrb[0].mxu0
          %v1148 = vadd.f32 %v954, %v1147
          %1149 = vmatprep.mubr.bf16.mxu0 0
          %1150 = vmatmul.mubr.bf16.gmra.mrb[0].mxu0 %v921
          %v1151 = vpop.f32.mrb[0].mxu0
          %v1152 = vadd.f32 %v950, %v1151
          %v1153 = vpop.f32.mrb[0].mxu0
          %v1154 = vadd.f32 %v954, %v1153
          %v1155 = vpop.f32.mrb[0].mxu0
          %v1156 = vadd.f32 %v950, %v1155
          %v1157 = vpop.f32.mrb[0].mxu0
          %v1158 = vadd.f32 %v954, %v1157
          %1159 = vmatprep.mubr.bf16.mxu0 0
          %1160 = vmatmul.mubr.bf16.gmra.mrb[0].mxu0 %v922
          %v1161 = vpop.f32.mrb[0].mxu0
          %v1162 = vadd.f32 %v950, %v1161
          %v1163 = vpop.f32.mrb[0].mxu0
          %v1164 = vadd.f32 %v954, %v1163
          %v1165 = vpop.f32.mrb[0].mxu0
          %v1166 = vadd.f32 %v950, %v1165
          %v1167 = vpop.f32.mrb[0].mxu0
          %v1168 = vadd.f32 %v954, %v1167
          %1169 = vmatprep.mubr.bf16.mxu0 0
          %1170 = vmatmul.mubr.bf16.gmra.mrb[0].mxu0 %v923
          %v1171 = vpop.f32.mrb[0].mxu0
          %v1172 = vadd.f32 %v950, %v1171
          %v1173 = vpop.f32.mrb[0].mxu0
          %v1174 = vadd.f32 %v954, %v1173
          %v1175 = vpop.f32.mrb[0].mxu0
          %v1176 = vadd.f32 %v950, %v1175
          %v1177 = vpop.f32.mrb[0].mxu0
          %v1178 = vadd.f32 %v954, %v1177
          %1179 = vmatprep.mubr.bf16.mxu0 0
          %1180 = vmatmul.mubr.bf16.gmra.mrb[0].mxu0 %v924
          %v1181 = vpop.f32.mrb[0].mxu0
          %v1182 = vadd.f32 %v950, %v1181
          %v1183 = vpop.f32.mrb[0].mxu0
          %v1184 = vadd.f32 %v954, %v1183
          %v1185 = vpop.f32.mrb[0].mxu0
          %v1186 = vadd.f32 %v950, %v1185
          %v1187 = vpop.f32.mrb[0].mxu0
          %v1188 = vadd.f32 %v954, %v1187
          %1189 = vmatprep.mubr.bf16.mxu0 0
          %1190 = vmatmul.mubr.bf16.gmra.mrb[0].mxu0 %v925
          %v1191 = vpop.f32.mrb[0].mxu0
          %v1192 = vadd.f32 %v950, %v1191
          %v1193 = vpop.f32.mrb[0].mxu0
          %v1194 = vadd.f32 %v954, %v1193
          %v1195 = vpop.f32.mrb[0].mxu0
          %v1196 = vadd.f32 %v950, %v1195
          %v1197 = vpop.f32.mrb[0].mxu0
          %v1198 = vadd.f32 %v954, %v1197
          %1199 = vmatprep.mubr.bf16.mxu0 0
          %1200 = vmatmul.mubr.bf16.gmra.mrb[0].mxu0 %v926
          %v1201 = vpop.f32.mrb[0].mxu0
          %v1202 = vadd.f32 %v950, %v1201
          %v1203 = vpop.f32.mrb[0].mxu0
          %v1204 = vadd.f32 %v954, %v1203
          %v1205 = vpop.f32.mrb[0].mxu0
          %v1206 = vadd.f32 %v950, %v1205
          %v1207 = vpop.f32.mrb[0].mxu0
          %v1208 = vadd.f32 %v954, %v1207
          %1209 = vmatprep.mubr.bf16.mxu0 0
          %1210 = vmatmul.mubr.bf16.gmra.mrb[0].mxu0 %v927
          %v1211 = vpop.f32.mrb[0].mxu0
          %v1212 = vadd.f32 %v950, %v1211
          %v1213 = vpop.f32.mrb[0].mxu0
          %v1214 = vadd.f32 %v954, %v1213
          %v1215 = vpop.f32.mrb[0].mxu0
          %v1216 = vadd.f32 %v950, %v1215
          %v1217 = vpop.f32.mrb[0].mxu0
          %v1218 = vadd.f32 %v954, %v1217
          %1219 = vmatprep.mubr.bf16.mxu0 0
          %1220 = vmatmul.mubr.bf16.gmra.mrb[0].mxu0 %v928
          %v1221 = vpop.f32.mrb[0].mxu0
          %v1222 = vadd.f32 %v950, %v1221
          %v1223 = vpop.f32.mrb[0].mxu0
          %v1224 = vadd.f32 %v954, %v1223
          %v1225 = vpop.f32.mrb[0].mxu0
          %v1226 = vadd.f32 %v950, %v1225
          %v1227 = vpop.f32.mrb[0].mxu0
          %v1228 = vadd.f32 %v954, %v1227
          %1229 = vdwg.mxu0
          %1230 = vst [vmem:[%s268] sm:$0xff] %v1072
          %1231 = vst [vmem:[%s268 + $0x8] sm:$0xff] %v1074
          %1232 = vst [vmem:[%s268 + $0x10] sm:$0xff] %v1076
          %1233 = vst [vmem:[%s268 + $0x18] sm:$0xff] %v1078
          %1234 = vst [vmem:[%s268 + $0x20] sm:$0xff] %v1082
          %1235 = vst [vmem:[%s268 + $0x28] sm:$0xff] %v1084
          %1236 = vst [vmem:[%s268 + $0x30] sm:$0xff] %v1086
          %1237 = vst [vmem:[%s268 + $0x38] sm:$0xff] %v1088
          %1238 = vst [vmem:[%s268 + $0x40] sm:$0xff] %v1092
          %1239 = vst [vmem:[%s268 + $0x48] sm:$0xff] %v1094
          %1240 = vst [vmem:[%s268 + $0x50] sm:$0xff] %v1096
          %1241 = vst [vmem:[%s268 + $0x58] sm:$0xff] %v1098
          %1242 = vst [vmem:[%s268 + $0x60] sm:$0xff] %v1102
          %1243 = vst [vmem:[%s268 + $0x68] sm:$0xff] %v1104
          %1244 = vst [vmem:[%s268 + $0x70] sm:$0xff] %v1106
          %1245 = vst [vmem:[%s268 + $0x78] sm:$0xff] %v1108
          %1246 = vst [vmem:[%s268 + $0x80] sm:$0xff] %v1112
          %1247 = vst [vmem:[%s268 + $0x88] sm:$0xff] %v1114
          %1248 = vst [vmem:[%s268 + $0x90] sm:$0xff] %v1116
          %1249 = vst [vmem:[%s268 + $0x98] sm:$0xff] %v1118
          %1250 = vst [vmem:[%s268 + $0xa0] sm:$0xff] %v1122
          %1251 = vst [vmem:[%s268 + $0xa8] sm:$0xff] %v1124
          %1252 = vst [vmem:[%s268 + $0xb0] sm:$0xff] %v1126
          %1253 = vst [vmem:[%s268 + $0xb8] sm:$0xff] %v1128
          %1254 = vst [vmem:[%s268 + $0xc0] sm:$0xff] %v1132
          %1255 = vst [vmem:[%s268 + $0xc8] sm:$0xff] %v1134
          %1256 = vst [vmem:[%s268 + $0xd0] sm:$0xff] %v1136
          %1257 = vst [vmem:[%s268 + $0xd8] sm:$0xff] %v1138
          %1258 = vst [vmem:[%s268 + $0xe0] sm:$0xff] %v1142
          %1259 = vst [vmem:[%s268 + $0xe8] sm:$0xff] %v1144
          %1260 = vst [vmem:[%s268 + $0xf0] sm:$0xff] %v1146
          %1261 = vst [vmem:[%s268 + $0xf8] sm:$0xff] %v1148
          %1262 = vst [vmem:[%s268 + $0x100] sm:$0xff] %v1152
          %1263 = vst [vmem:[%s268 + $0x108] sm:$0xff] %v1154
          %1264 = vst [vmem:[%s268 + $0x110] sm:$0xff] %v1156
          %1265 = vst [vmem:[%s268 + $0x118] sm:$0xff] %v1158
          %1266 = vst [vmem:[%s268 + $0x120] sm:$0xff] %v1162
          %1267 = vst [vmem:[%s268 + $0x128] sm:$0xff] %v1164
          %1268 = vst [vmem:[%s268 + $0x130] sm:$0xff] %v1166
          %1269 = vst [vmem:[%s268 + $0x138] sm:$0xff] %v1168
          %1270 = vst [vmem:[%s268 + $0x140] sm:$0xff] %v1172
          %1271 = vst [vmem:[%s268 + $0x148] sm:$0xff] %v1174
          %1272 = vst [vmem:[%s268 + $0x150] sm:$0xff] %v1176
          %1273 = vst [vmem:[%s268 + $0x158] sm:$0xff] %v1178
          %1274 = vst [vmem:[%s268 + $0x160] sm:$0xff] %v1182
          %1275 = vst [vmem:[%s268 + $0x168] sm:$0xff] %v1184
          %1276 = vst [vmem:[%s268 + $0x170] sm:$0xff] %v1186
          %1277 = vst [vmem:[%s268 + $0x178] sm:$0xff] %v1188
          %1278 = vst [vmem:[%s268 + $0x180] sm:$0xff] %v1192
          %1279 = vst [vmem:[%s268 + $0x188] sm:$0xff] %v1194
          %1280 = vst [vmem:[%s268 + $0x190] sm:$0xff] %v1196
          %1281 = vst [vmem:[%s268 + $0x198] sm:$0xff] %v1198
          %1282 = vst [vmem:[%s268 + $0x1a0] sm:$0xff] %v1202
          %1283 = vst [vmem:[%s268 + $0x1a8] sm:$0xff] %v1204
          %1284 = vst [vmem:[%s268 + $0x1b0] sm:$0xff] %v1206
          %1285 = vst [vmem:[%s268 + $0x1b8] sm:$0xff] %v1208
          %1286 = vst [vmem:[%s268 + $0x1c0] sm:$0xff] %v1212
          %1287 = vst [vmem:[%s268 + $0x1c8] sm:$0xff] %v1214
          %1288 = vst [vmem:[%s268 + $0x1d0] sm:$0xff] %v1216
          %1289 = vst [vmem:[%s268 + $0x1d8] sm:$0xff] %v1218
          %1290 = vst [vmem:[%s268 + $0x1e0] sm:$0xff] %v1222
          %1291 = vst [vmem:[%s268 + $0x1e8] sm:$0xff] %v1224
          %1292 = vst [vmem:[%s268 + $0x1f0] sm:$0xff] %v1226
          %1293 = vst [vmem:[%s268 + $0x1f8] sm:$0xff] %v1228
        $region56: #{tpu_custom_call.1} parent=35 // pred_fallthru
          _
        %s1294 = sand.u32 %s133, 1
        %s1295 = scalar_lea.sflag [#allocation5], %s1294
        %s1296 = sand.u32 %s133, 1
        %s1297 = smul.addr %s1296, 512
        %s1298 = scalar_lea.vmem [#allocation9], %s1297
        // Predicated region
        $region57: #{tpu_custom_call.1} parent=35 // pred_check
          %p1299 = pneg %p143
        $region58: #{tpu_custom_call.1} parent=35 // pred_check_branch
          %1301 = sbr.rel (%p1299) target = $region60
        $region59: #{tpu_custom_call.1} parent=35 // pred_region
          %s1302 = smul.u32 32, %s26
          %s1303 = ssub.s32 63, %s1302
          %p1304 = scmp.lt.s32.totalorder %s1303, 32
          %s1305 = scalar_select %p1304, %s1303, 32
          %s1306 = smul.u32 128, %s1305
          %s1307 = smul.u32 %s1306, 2
          %s1309 = ssub.s32 8192, %s1307
          %1310 = vsyncadd %s1295, %s1309
          %p1311 = scmp.ne.s32.totalorder 0, %s1307
          %s1312 = smul.addr %s1302, 2
          %s1313 = smul.addr %s1312, 128
          %s1314 = scalar_lea.hbm %s4, %s1313
          %s1315 = smul.u32 16, %s1305
          %s1316 = sshll.u32 %s1298, 4
          %s1317 = int_to_ptr.vmem [resolvable:$true] %s1316
          %s1318 = sshll.u32 %s1315, 4
          %1322 = dma.vmem_to_hbm [thread:$0]  (%p1311), %s1317, %s1318, %s1314, %s1295, 256, 256, 16
        $region60: #{tpu_custom_call.1} parent=35 // pred_fallthru
          _
      $region36: #{tpu_custom_call.1} parent=5 // pred_fallthru
        _
      %p1323 = scmp.le.s32.totalorder 2, %s17
      // Predicated region
      $region61: #{tpu_custom_call.1} parent=5 // pred_check
        %p1324 = pneg %p1323
      $region62: #{tpu_custom_call.1} parent=5 // pred_check_branch
        %1326 = sbr.rel (%p1324) target = $region64
      $region63: #{tpu_custom_call.1} parent=5 // pred_region
        %s1327 = ssub.s32 %s17, 2
        // Predicated region
        $region65: #{tpu_custom_call.1} parent=63 // pred_check
          %p1328 = pneg %p149
        $region66: #{tpu_custom_call.1} parent=63 // pred_check_branch
          %1330 = sbr.rel (%p1328) target = $region68
        $region67: #{tpu_custom_call.1} parent=63 // pred_region
          %s1331 = sand.u32 %s134, 1
          %s1332 = scalar_lea.sflag [#allocation5], %s1331
          %s1333 = sand.u32 %s134, 1
          %s1334 = smul.addr %s1333, 512
          %s1335 = scalar_lea.vmem [#allocation9], %s1334
          %1336 = dma.done %s1332, 8192
        $region68: #{tpu_custom_call.1} parent=63 // pred_fallthru
          _
      $region64: #{tpu_custom_call.1} parent=5 // pred_fallthru
        _
    $region6: #{tpu_custom_call.1} parent=1 // loop_footer
      %s21 = sadd.s32 1, %s17
    $region7: #{tpu_custom_call.1} parent=1 // loop_footer_branch
      %16 = sbr.rel target = $region3
    $region8: #{tpu_custom_call.1} parent=1 // loop_exit
      _
    %1337 = vsyncpa [#allocation4], 1
    %s1338 = scalar_lea.sflag [#allocation4], 1
    %1339 = vsyncpa %s1338, 1
    %1340 = vsyncpa [#allocation7], 1
    %1341 = vsyncpa [#allocation5], 1
    %s1342 = scalar_lea.sflag [#allocation5], 1
    %1343 = vsyncpa %s1342, 1

</llo_original>
